<compile_context>
chip_gen: v7x
topology: tpu7x:2x2x1
jax: 0.10.0
libtpu: 0.0.40
codegen_flags: <defaults>
</compile_context>

<pallas_src>
import functools

import jax
import jax.numpy as jnp
from jax import lax
from jax.experimental import pallas as pl
from jax.experimental.pallas import tpu as pltpu


# ----------------------------------------------------------------------------
# Fused kernel: one grid step == one batch element
# ----------------------------------------------------------------------------
def _fused_mha_kernel(q_ref, k_ref, v_ref,
                      wq_ref, bq_ref, wk_ref, bk_ref, wv_ref, bv_ref,
                      wo_ref, bo_ref,
                      o_ref, *w_refs, num_heads, head_dim):
    x_q = q_ref[0]                      # (Sq, E)
    x_k = k_ref[0]                      # (Sk, kdim)
    x_v = v_ref[0]                      # (Sk, vdim)

    scale = 1.0 / float(head_dim) ** 0.5

    # ---- projections (stay in VMEM) ----
    # Fold the softmax scale into Q (cheaper than scaling the (Sq, Sk) scores).
    q = (jnp.dot(x_q, wq_ref[...], preferred_element_type=jnp.float32)
         + bq_ref[...]) * scale                                    # (Sq, E)
    k = jnp.dot(x_k, wk_ref[...], preferred_element_type=jnp.float32) + bk_ref[...]
    v = jnp.dot(x_v, wv_ref[...], preferred_element_type=jnp.float32) + bv_ref[...]

    # ---- per-head attention (static unroll over heads) ----
    head_outs = []
    for h in range(num_heads):
        sl = slice(h * head_dim, (h + 1) * head_dim)   # static lane slice
        qh = q[:, sl]                    # (Sq, Dh)
        kh = k[:, sl]                    # (Sk, Dh)
        vh = v[:, sl]                    # (Sk, Dh)

        # Contract the last axes of q and k directly (no explicit transpose).
        s = lax.dot_general(qh, kh, (((1,), (1,)), ((), ())),
                            preferred_element_type=jnp.float32)   # (Sq, Sk)

        # Numerically stable softmax; divide expressed as reciprocal-multiply.
        # (exact reciprocal keeps the returned attn_weights bit-close to ref.)
        s = s - jnp.max(s, axis=-1, keepdims=True)
        e = jnp.exp(s)
        p = e * pl.reciprocal(jnp.sum(e, axis=-1, keepdims=True))

        if w_refs:                       # attn_weights output is optional
            w_refs[0][0, h] = p.astype(w_refs[0].dtype)

        head_outs.append(
            jnp.dot(p, vh, preferred_element_type=jnp.float32))   # (Sq, Dh)

    concat = jnp.concatenate(head_outs, axis=-1)                  # (Sq, E)

    # ---- output projection ----
    out = jnp.dot(concat, wo_ref[...], preferred_element_type=jnp.float32) + bo_ref[...]
    o_ref[0] = out.astype(o_ref.dtype)


# ----------------------------------------------------------------------------
# Wrapper: CustomMultiHeadAttention.forward(query, key, value)
# ----------------------------------------------------------------------------
def custom_mha_forward(query, key, value, params, num_heads, return_weights=True):
    B, Sq, E = query.shape
    Sk, kdim = key.shape[1], key.shape[2]
    vdim = value.shape[2]
    assert E % num_heads == 0, "embed_dim must be divisible by num_heads"
    head_dim = E // num_heads

    # torch nn.Linear: y = x @ W.T + b  ->  pre-transpose W once (glue only).
    wq_t = params["wq"].T                # (E, E)
    wk_t = params["wk"].T                # (kdim, E)
    wv_t = params["wv"].T                # (vdim, E)
    wo_t = params["wo"].T                # (E, E)
    bq = params["bq"].reshape(1, E)
    bk = params["bk"].reshape(1, E)
    bv = params["bv"].reshape(1, E)
    bo = params["bo"].reshape(1, E)

    kernel = functools.partial(_fused_mha_kernel,
                               num_heads=num_heads, head_dim=head_dim)

    out_shapes = [jax.ShapeDtypeStruct((B, Sq, E), query.dtype)]
    out_specs = [pl.BlockSpec((1, Sq, E), lambda b: (b, 0, 0))]
    if return_weights:
        out_shapes.append(
            jax.ShapeDtypeStruct((B, num_heads, Sq, Sk), jnp.float32))
        out_specs.append(
            pl.BlockSpec((1, num_heads, Sq, Sk), lambda b: (b, 0, 0, 0)))

    in_specs = [
        pl.BlockSpec((1, Sq, E), lambda b: (b, 0, 0)),       # query
        pl.BlockSpec((1, Sk, kdim), lambda b: (b, 0, 0)),    # key
        pl.BlockSpec((1, Sk, vdim), lambda b: (b, 0, 0)),    # value
        pl.BlockSpec((E, E), lambda b: (0, 0)),              # wq^T (VMEM-resident)
        pl.BlockSpec((1, E), lambda b: (0, 0)),              # bq
        pl.BlockSpec((kdim, E), lambda b: (0, 0)),           # wk^T
        pl.BlockSpec((1, E), lambda b: (0, 0)),              # bk
        pl.BlockSpec((vdim, E), lambda b: (0, 0)),           # wv^T
        pl.BlockSpec((1, E), lambda b: (0, 0)),              # bv
        pl.BlockSpec((E, E), lambda b: (0, 0)),              # wo^T
        pl.BlockSpec((1, E), lambda b: (0, 0)),              # bo
    ]

    results = pl.pallas_call(
        kernel,
        out_shape=tuple(out_shapes),
        grid=(B,),
        in_specs=in_specs,
        out_specs=tuple(out_specs),
        compiler_params=pltpu.CompilerParams(
            dimension_semantics=("parallel",)),   # batch splits across TCs (v7x)
    )(query, key, value, wq_t, bq, wk_t, bk, wv_t, bv, wo_t, bo)

    if return_weights:
        return results[0], results[1]
    return results[0], None


# ----------------------------------------------------------------------------
# Pure-JAX reference (mirrors the PyTorch forward) for correctness check
# ----------------------------------------------------------------------------
def reference_mha(query, key, value, params, num_heads):
    B, Sq, E = query.shape
    Sk = key.shape[1]
    head_dim = E // num_heads
    q = query @ params["wq"].T + params["bq"]
    k = key @ params["wk"].T + params["bk"]
    v = value @ params["wv"].T + params["bv"]
    qh = q.reshape(B, Sq, num_heads, head_dim).transpose(0, 2, 1, 3)
    kh = k.reshape(B, Sk, num_heads, head_dim).transpose(0, 2, 1, 3)
    vh = v.reshape(B, Sk, num_heads, head_dim).transpose(0, 2, 1, 3)
    scores = jnp.einsum("bhqd,bhkd->bhqk", qh, kh) / head_dim ** 0.5
    attn_weights = jax.nn.softmax(scores, axis=-1)
    attn_out = jnp.einsum("bhqk,bhkd->bhqd", attn_weights, vh)
    concat = attn_out.transpose(0, 2, 1, 3).reshape(B, Sq, E)
    out = concat @ params["wo"].T + params["bo"]
    return out, attn_weights


if __name__ == "__main__":
    # Module config (small, consistent with __init__)
    embed_dim = 32
    num_heads = 4
    kdim = embed_dim
    vdim = embed_dim
    batch, seq = 2, 8

    root = jax.random.PRNGKey(0)
    keys = jax.random.split(root, 12)
    scale = 0.1

    params = {
        "wq": scale * jax.random.normal(keys[0], (embed_dim, embed_dim), jnp.float32),
        "bq": scale * jax.random.normal(keys[1], (embed_dim,), jnp.float32),
        "wk": scale * jax.random.normal(keys[2], (embed_dim, kdim), jnp.float32),
        "bk": scale * jax.random.normal(keys[3], (embed_dim,), jnp.float32),
        "wv": scale * jax.random.normal(keys[4], (embed_dim, vdim), jnp.float32),
        "bv": scale * jax.random.normal(keys[5], (embed_dim,), jnp.float32),
        "wo": scale * jax.random.normal(keys[6], (embed_dim, embed_dim), jnp.float32),
        "bo": scale * jax.random.normal(keys[7], (embed_dim,), jnp.float32),
    }

    query = jax.random.normal(keys[8], (batch, seq, embed_dim), jnp.float32)
    key_in = jax.random.normal(keys[9], (batch, seq, kdim), jnp.float32)
    value_in = jax.random.normal(keys[10], (batch, seq, vdim), jnp.float32)

    out, attn_w = custom_mha_forward(query, key_in, value_in, params, num_heads)
    out, attn_w = jax.block_until_ready((out, attn_w))

    ref_out, ref_w = reference_mha(query, key_in, value_in, params, num_heads)
    assert out.shape == (batch, seq, embed_dim)
    assert attn_w.shape == (batch, num_heads, seq, seq)
    assert jnp.allclose(out, ref_out, atol=2e-5, rtol=2e-5)
    assert jnp.allclose(attn_w, ref_w, atol=2e-5, rtol=2e-5)

    # Also exercise the weights-free fast path (half the HBM writeback).
    out_nw, _ = custom_mha_forward(query, key_in, value_in, params, num_heads,
                                   return_weights=False)
    out_nw = jax.block_until_ready(out_nw)
    assert jnp.allclose(out_nw, ref_out, atol=2e-5, rtol=2e-5)

    print("KERNEL_OK")
</pallas_src>

<mosaic_0001>
module attributes {stable_mosaic.version = 11 : i64} {
  func.func @_fused_mha_kernel(%arg0: i32, %arg1: memref<1x8x32xf32, #tpu.memory_space<vmem>>, %arg2: memref<1x8x32xf32, #tpu.memory_space<vmem>>, %arg3: memref<1x8x32xf32, #tpu.memory_space<vmem>>, %arg4: memref<32x32xf32, #tpu.memory_space<vmem>>, %arg5: memref<1x32xf32, #tpu.memory_space<vmem>>, %arg6: memref<32x32xf32, #tpu.memory_space<vmem>>, %arg7: memref<1x32xf32, #tpu.memory_space<vmem>>, %arg8: memref<32x32xf32, #tpu.memory_space<vmem>>, %arg9: memref<1x32xf32, #tpu.memory_space<vmem>>, %arg10: memref<32x32xf32, #tpu.memory_space<vmem>>, %arg11: memref<1x32xf32, #tpu.memory_space<vmem>>, %arg12: memref<1x8x32xf32, #tpu.memory_space<vmem>>, %arg13: memref<1x4x8x8xf32, #tpu.memory_space<vmem>>) attributes {dimension_semantics = [#tpu.dimension_semantics<parallel>], iteration_bounds = array<i64: 2>, scalar_prefetch = 0 : i64, scratch_operands = 0 : i64, tpu.core_type = #tpu.core_type<tc>, window_params = [{transform_indices = @transform_0, window_bounds = array<i64: 1, 8, 32>}, {transform_indices = @transform_1, window_bounds = array<i64: 1, 8, 32>}, {transform_indices = @transform_2, window_bounds = array<i64: 1, 8, 32>}, {pipeline_mode = #tpu.pipeline_mode<synchronous>, transform_indices = @transform_3, window_bounds = array<i64: 32, 32>}, {pipeline_mode = #tpu.pipeline_mode<synchronous>, transform_indices = @transform_4, window_bounds = array<i64: 1, 32>}, {pipeline_mode = #tpu.pipeline_mode<synchronous>, transform_indices = @transform_5, window_bounds = array<i64: 32, 32>}, {pipeline_mode = #tpu.pipeline_mode<synchronous>, transform_indices = @transform_6, window_bounds = array<i64: 1, 32>}, {pipeline_mode = #tpu.pipeline_mode<synchronous>, transform_indices = @transform_7, window_bounds = array<i64: 32, 32>}, {pipeline_mode = #tpu.pipeline_mode<synchronous>, transform_indices = @transform_8, window_bounds = array<i64: 1, 32>}, {pipeline_mode = #tpu.pipeline_mode<synchronous>, transform_indices = @transform_9, window_bounds = array<i64: 32, 32>}, {pipeline_mode = #tpu.pipeline_mode<synchronous>, transform_indices = @transform_10, window_bounds = array<i64: 1, 32>}, {transform_indices = @transform_11, window_bounds = array<i64: 1, 8, 32>}, {transform_indices = @transform_12, window_bounds = array<i64: 1, 4, 8, 8>}]} {
    %c0 = arith.constant 0 : index
    %c0_0 = arith.constant 0 : index
    %c0_1 = arith.constant 0 : index
    %0 = vector.load %arg1[%c0, %c0_0, %c0_1] : memref<1x8x32xf32, #tpu.memory_space<vmem>>, vector<1x8x32xf32>
    %1 = vector.shape_cast %0 : vector<1x8x32xf32> to vector<8x32xf32>
    %c0_2 = arith.constant 0 : index
    %c0_3 = arith.constant 0 : index
    %c0_4 = arith.constant 0 : index
    %2 = vector.load %arg2[%c0_2, %c0_3, %c0_4] : memref<1x8x32xf32, #tpu.memory_space<vmem>>, vector<1x8x32xf32>
    %3 = vector.shape_cast %2 : vector<1x8x32xf32> to vector<8x32xf32>
    %c0_5 = arith.constant 0 : index
    %c0_6 = arith.constant 0 : index
    %c0_7 = arith.constant 0 : index
    %4 = vector.load %arg3[%c0_5, %c0_6, %c0_7] : memref<1x8x32xf32, #tpu.memory_space<vmem>>, vector<1x8x32xf32>
    %5 = vector.shape_cast %4 : vector<1x8x32xf32> to vector<8x32xf32>
    %c0_8 = arith.constant 0 : index
    %c0_9 = arith.constant 0 : index
    %6 = vector.load %arg4[%c0_8, %c0_9] : memref<32x32xf32, #tpu.memory_space<vmem>>, vector<32x32xf32>
    %cst = arith.constant dense<0.000000e+00> : vector<8x32xf32>
    %7 = tpu.matmul %1, %6, %cst {dimension_numbers = #tpu.dot_dimension_numbers<[1], [0], [0], [1], [0, 0, 1, 1], [], []>} : vector<8x32xf32>, vector<32x32xf32>, vector<8x32xf32> -> vector<8x32xf32>
    %c0_10 = arith.constant 0 : index
    %c0_11 = arith.constant 0 : index
    %8 = vector.load %arg5[%c0_10, %c0_11] : memref<1x32xf32, #tpu.memory_space<vmem>>, vector<1x32xf32>
    %9 = vector.broadcast %8 : vector<1x32xf32> to vector<8x32xf32>
    %10 = arith.addf %7, %9 : vector<8x32xf32>
    %cst_12 = arith.constant 0.353553385 : f32
    %11 = vector.broadcast %cst_12 : f32 to vector<8x32xf32>
    %12 = arith.mulf %10, %11 : vector<8x32xf32>
    %c0_13 = arith.constant 0 : index
    %c0_14 = arith.constant 0 : index
    %13 = vector.load %arg6[%c0_13, %c0_14] : memref<32x32xf32, #tpu.memory_space<vmem>>, vector<32x32xf32>
    %cst_15 = arith.constant dense<0.000000e+00> : vector<8x32xf32>
    %14 = tpu.matmul %3, %13, %cst_15 {dimension_numbers = #tpu.dot_dimension_numbers<[1], [0], [0], [1], [0, 0, 1, 1], [], []>} : vector<8x32xf32>, vector<32x32xf32>, vector<8x32xf32> -> vector<8x32xf32>
    %c0_16 = arith.constant 0 : index
    %c0_17 = arith.constant 0 : index
    %15 = vector.load %arg7[%c0_16, %c0_17] : memref<1x32xf32, #tpu.memory_space<vmem>>, vector<1x32xf32>
    %16 = vector.broadcast %15 : vector<1x32xf32> to vector<8x32xf32>
    %17 = arith.addf %14, %16 : vector<8x32xf32>
    %c0_18 = arith.constant 0 : index
    %c0_19 = arith.constant 0 : index
    %18 = vector.load %arg8[%c0_18, %c0_19] : memref<32x32xf32, #tpu.memory_space<vmem>>, vector<32x32xf32>
    %cst_20 = arith.constant dense<0.000000e+00> : vector<8x32xf32>
    %19 = tpu.matmul %5, %18, %cst_20 {dimension_numbers = #tpu.dot_dimension_numbers<[1], [0], [0], [1], [0, 0, 1, 1], [], []>} : vector<8x32xf32>, vector<32x32xf32>, vector<8x32xf32> -> vector<8x32xf32>
    %c0_21 = arith.constant 0 : index
    %c0_22 = arith.constant 0 : index
    %20 = vector.load %arg9[%c0_21, %c0_22] : memref<1x32xf32, #tpu.memory_space<vmem>>, vector<1x32xf32>
    %21 = vector.broadcast %20 : vector<1x32xf32> to vector<8x32xf32>
    %22 = arith.addf %19, %21 : vector<8x32xf32>
    %23 = vector.extract_strided_slice %12 {offsets = [0, 0], sizes = [8, 8], strides = [1, 1]} : vector<8x32xf32> to vector<8x8xf32>
    %24 = vector.extract_strided_slice %17 {offsets = [0, 0], sizes = [8, 8], strides = [1, 1]} : vector<8x32xf32> to vector<8x8xf32>
    %25 = vector.extract_strided_slice %22 {offsets = [0, 0], sizes = [8, 8], strides = [1, 1]} : vector<8x32xf32> to vector<8x8xf32>
    %cst_23 = arith.constant dense<0.000000e+00> : vector<8x8xf32>
    %26 = tpu.matmul %23, %24, %cst_23 {dimension_numbers = #tpu.dot_dimension_numbers<[1], [1], [0], [0], [0, 0, 1, 0], [], []>} : vector<8x8xf32>, vector<8x8xf32>, vector<8x8xf32> -> vector<8x8xf32>
    %cst_24 = arith.constant dense<0xFF800000> : vector<8xf32>
    %27 = vector.multi_reduction <maximumf>, %26, %cst_24 [1] : vector<8x8xf32> to vector<8xf32>
    %28 = vector.shape_cast %27 : vector<8xf32> to vector<8x1xf32>
    %29 = vector.broadcast %28 : vector<8x1xf32> to vector<8x8xf32>
    %30 = arith.subf %26, %29 : vector<8x8xf32>
    %31 = math.exp %30 : vector<8x8xf32>
    %cst_25 = arith.constant dense<0.000000e+00> : vector<8xf32>
    %32 = vector.multi_reduction <add>, %31, %cst_25 [1] : vector<8x8xf32> to vector<8xf32>
    %33 = vector.shape_cast %32 : vector<8xf32> to vector<8x1xf32>
    %34 = tpu.reciprocal %33 : vector<8x1xf32> -> vector<8x1xf32>
    %35 = vector.broadcast %34 : vector<8x1xf32> to vector<8x8xf32>
    %36 = arith.mulf %31, %35 : vector<8x8xf32>
    %c0_26 = arith.constant 0 : index
    %c0_27 = arith.constant 0 : index
    %c0_28 = arith.constant 0 : index
    %c0_29 = arith.constant 0 : index
    %37 = vector.load %arg13[%c0_26, %c0_27, %c0_28, %c0_29] : memref<1x4x8x8xf32, #tpu.memory_space<vmem>>, vector<1x1x8x8xf32>
    %38 = vector.shape_cast %37 : vector<1x1x8x8xf32> to vector<8x8xf32>
    %39 = vector.shape_cast %36 : vector<8x8xf32> to vector<1x1x8x8xf32>
    tpu.vector_store %arg13[%c0_26, %c0_27, %c0_28, %c0_29], %39 {strides = array<i32>} : memref<1x4x8x8xf32, #tpu.memory_space<vmem>>, vector<1x1x8x8xf32>,
    %cst_30 = arith.constant dense<0.000000e+00> : vector<8x8xf32>
    %40 = tpu.matmul %36, %25, %cst_30 {dimension_numbers = #tpu.dot_dimension_numbers<[1], [0], [0], [1], [0, 0, 1, 1], [], []>} : vector<8x8xf32>, vector<8x8xf32>, vector<8x8xf32> -> vector<8x8xf32>
    %41 = vector.extract_strided_slice %12 {offsets = [0, 8], sizes = [8, 8], strides = [1, 1]} : vector<8x32xf32> to vector<8x8xf32>
    %42 = vector.extract_strided_slice %17 {offsets = [0, 8], sizes = [8, 8], strides = [1, 1]} : vector<8x32xf32> to vector<8x8xf32>
    %43 = vector.extract_strided_slice %22 {offsets = [0, 8], sizes = [8, 8], strides = [1, 1]} : vector<8x32xf32> to vector<8x8xf32>
    %cst_31 = arith.constant dense<0.000000e+00> : vector<8x8xf32>
    %44 = tpu.matmul %41, %42, %cst_31 {dimension_numbers = #tpu.dot_dimension_numbers<[1], [1], [0], [0], [0, 0, 1, 0], [], []>} : vector<8x8xf32>, vector<8x8xf32>, vector<8x8xf32> -> vector<8x8xf32>
    %cst_32 = arith.constant dense<0xFF800000> : vector<8xf32>
    %45 = vector.multi_reduction <maximumf>, %44, %cst_32 [1] : vector<8x8xf32> to vector<8xf32>
    %46 = vector.shape_cast %45 : vector<8xf32> to vector<8x1xf32>
    %47 = vector.broadcast %46 : vector<8x1xf32> to vector<8x8xf32>
    %48 = arith.subf %44, %47 : vector<8x8xf32>
    %49 = math.exp %48 : vector<8x8xf32>
    %cst_33 = arith.constant dense<0.000000e+00> : vector<8xf32>
    %50 = vector.multi_reduction <add>, %49, %cst_33 [1] : vector<8x8xf32> to vector<8xf32>
    %51 = vector.shape_cast %50 : vector<8xf32> to vector<8x1xf32>
    %52 = tpu.reciprocal %51 : vector<8x1xf32> -> vector<8x1xf32>
    %53 = vector.broadcast %52 : vector<8x1xf32> to vector<8x8xf32>
    %54 = arith.mulf %49, %53 : vector<8x8xf32>
    %c0_34 = arith.constant 0 : index
    %c1 = arith.constant 1 : index
    %c0_35 = arith.constant 0 : index
    %c0_36 = arith.constant 0 : index
    %55 = vector.load %arg13[%c0_34, %c1, %c0_35, %c0_36] : memref<1x4x8x8xf32, #tpu.memory_space<vmem>>, vector<1x1x8x8xf32>
    %56 = vector.shape_cast %55 : vector<1x1x8x8xf32> to vector<8x8xf32>
    %57 = vector.shape_cast %54 : vector<8x8xf32> to vector<1x1x8x8xf32>
    tpu.vector_store %arg13[%c0_34, %c1, %c0_35, %c0_36], %57 {strides = array<i32>} : memref<1x4x8x8xf32, #tpu.memory_space<vmem>>, vector<1x1x8x8xf32>,
    %cst_37 = arith.constant dense<0.000000e+00> : vector<8x8xf32>
    %58 = tpu.matmul %54, %43, %cst_37 {dimension_numbers = #tpu.dot_dimension_numbers<[1], [0], [0], [1], [0, 0, 1, 1], [], []>} : vector<8x8xf32>, vector<8x8xf32>, vector<8x8xf32> -> vector<8x8xf32>
    %59 = vector.extract_strided_slice %12 {offsets = [0, 16], sizes = [8, 8], strides = [1, 1]} : vector<8x32xf32> to vector<8x8xf32>
    %60 = vector.extract_strided_slice %17 {offsets = [0, 16], sizes = [8, 8], strides = [1, 1]} : vector<8x32xf32> to vector<8x8xf32>
    %61 = vector.extract_strided_slice %22 {offsets = [0, 16], sizes = [8, 8], strides = [1, 1]} : vector<8x32xf32> to vector<8x8xf32>
    %cst_38 = arith.constant dense<0.000000e+00> : vector<8x8xf32>
    %62 = tpu.matmul %59, %60, %cst_38 {dimension_numbers = #tpu.dot_dimension_numbers<[1], [1], [0], [0], [0, 0, 1, 0], [], []>} : vector<8x8xf32>, vector<8x8xf32>, vector<8x8xf32> -> vector<8x8xf32>
    %cst_39 = arith.constant dense<0xFF800000> : vector<8xf32>
    %63 = vector.multi_reduction <maximumf>, %62, %cst_39 [1] : vector<8x8xf32> to vector<8xf32>
    %64 = vector.shape_cast %63 : vector<8xf32> to vector<8x1xf32>
    %65 = vector.broadcast %64 : vector<8x1xf32> to vector<8x8xf32>
    %66 = arith.subf %62, %65 : vector<8x8xf32>
    %67 = math.exp %66 : vector<8x8xf32>
    %cst_40 = arith.constant dense<0.000000e+00> : vector<8xf32>
    %68 = vector.multi_reduction <add>, %67, %cst_40 [1] : vector<8x8xf32> to vector<8xf32>
    %69 = vector.shape_cast %68 : vector<8xf32> to vector<8x1xf32>
    %70 = tpu.reciprocal %69 : vector<8x1xf32> -> vector<8x1xf32>
    %71 = vector.broadcast %70 : vector<8x1xf32> to vector<8x8xf32>
    %72 = arith.mulf %67, %71 : vector<8x8xf32>
    %c0_41 = arith.constant 0 : index
    %c2 = arith.constant 2 : index
    %c0_42 = arith.constant 0 : index
    %c0_43 = arith.constant 0 : index
    %73 = vector.load %arg13[%c0_41, %c2, %c0_42, %c0_43] : memref<1x4x8x8xf32, #tpu.memory_space<vmem>>, vector<1x1x8x8xf32>
    %74 = vector.shape_cast %73 : vector<1x1x8x8xf32> to vector<8x8xf32>
    %75 = vector.shape_cast %72 : vector<8x8xf32> to vector<1x1x8x8xf32>
    tpu.vector_store %arg13[%c0_41, %c2, %c0_42, %c0_43], %75 {strides = array<i32>} : memref<1x4x8x8xf32, #tpu.memory_space<vmem>>, vector<1x1x8x8xf32>,
    %cst_44 = arith.constant dense<0.000000e+00> : vector<8x8xf32>
    %76 = tpu.matmul %72, %61, %cst_44 {dimension_numbers = #tpu.dot_dimension_numbers<[1], [0], [0], [1], [0, 0, 1, 1], [], []>} : vector<8x8xf32>, vector<8x8xf32>, vector<8x8xf32> -> vector<8x8xf32>
    %77 = vector.extract_strided_slice %12 {offsets = [0, 24], sizes = [8, 8], strides = [1, 1]} : vector<8x32xf32> to vector<8x8xf32>
    %78 = vector.extract_strided_slice %17 {offsets = [0, 24], sizes = [8, 8], strides = [1, 1]} : vector<8x32xf32> to vector<8x8xf32>
    %79 = vector.extract_strided_slice %22 {offsets = [0, 24], sizes = [8, 8], strides = [1, 1]} : vector<8x32xf32> to vector<8x8xf32>
    %cst_45 = arith.constant dense<0.000000e+00> : vector<8x8xf32>
    %80 = tpu.matmul %77, %78, %cst_45 {dimension_numbers = #tpu.dot_dimension_numbers<[1], [1], [0], [0], [0, 0, 1, 0], [], []>} : vector<8x8xf32>, vector<8x8xf32>, vector<8x8xf32> -> vector<8x8xf32>
    %cst_46 = arith.constant dense<0xFF800000> : vector<8xf32>
    %81 = vector.multi_reduction <maximumf>, %80, %cst_46 [1] : vector<8x8xf32> to vector<8xf32>
    %82 = vector.shape_cast %81 : vector<8xf32> to vector<8x1xf32>
    %83 = vector.broadcast %82 : vector<8x1xf32> to vector<8x8xf32>
    %84 = arith.subf %80, %83 : vector<8x8xf32>
    %85 = math.exp %84 : vector<8x8xf32>
    %cst_47 = arith.constant dense<0.000000e+00> : vector<8xf32>
    %86 = vector.multi_reduction <add>, %85, %cst_47 [1] : vector<8x8xf32> to vector<8xf32>
    %87 = vector.shape_cast %86 : vector<8xf32> to vector<8x1xf32>
    %88 = tpu.reciprocal %87 : vector<8x1xf32> -> vector<8x1xf32>
    %89 = vector.broadcast %88 : vector<8x1xf32> to vector<8x8xf32>
    %90 = arith.mulf %85, %89 : vector<8x8xf32>
    %c0_48 = arith.constant 0 : index
    %c3 = arith.constant 3 : index
    %c0_49 = arith.constant 0 : index
    %c0_50 = arith.constant 0 : index
    %91 = vector.load %arg13[%c0_48, %c3, %c0_49, %c0_50] : memref<1x4x8x8xf32, #tpu.memory_space<vmem>>, vector<1x1x8x8xf32>
    %92 = vector.shape_cast %91 : vector<1x1x8x8xf32> to vector<8x8xf32>
    %93 = vector.shape_cast %90 : vector<8x8xf32> to vector<1x1x8x8xf32>
    tpu.vector_store %arg13[%c0_48, %c3, %c0_49, %c0_50], %93 {strides = array<i32>} : memref<1x4x8x8xf32, #tpu.memory_space<vmem>>, vector<1x1x8x8xf32>,
    %cst_51 = arith.constant dense<0.000000e+00> : vector<8x8xf32>
    %94 = tpu.matmul %90, %79, %cst_51 {dimension_numbers = #tpu.dot_dimension_numbers<[1], [0], [0], [1], [0, 0, 1, 1], [], []>} : vector<8x8xf32>, vector<8x8xf32>, vector<8x8xf32> -> vector<8x8xf32>
    %95 = tpu.concatenate %40, %58, %76, %94 in 1 : vector<8x8xf32>, vector<8x8xf32>, vector<8x8xf32>, vector<8x8xf32> -> vector<8x32xf32>
    %c0_52 = arith.constant 0 : index
    %c0_53 = arith.constant 0 : index
    %96 = vector.load %arg10[%c0_52, %c0_53] : memref<32x32xf32, #tpu.memory_space<vmem>>, vector<32x32xf32>
    %cst_54 = arith.constant dense<0.000000e+00> : vector<8x32xf32>
    %97 = tpu.matmul %95, %96, %cst_54 {dimension_numbers = #tpu.dot_dimension_numbers<[1], [0], [0], [1], [0, 0, 1, 1], [], []>} : vector<8x32xf32>, vector<32x32xf32>, vector<8x32xf32> -> vector<8x32xf32>
    %c0_55 = arith.constant 0 : index
    %c0_56 = arith.constant 0 : index
    %98 = vector.load %arg11[%c0_55, %c0_56] : memref<1x32xf32, #tpu.memory_space<vmem>>, vector<1x32xf32>
    %99 = vector.broadcast %98 : vector<1x32xf32> to vector<8x32xf32>
    %100 = arith.addf %97, %99 : vector<8x32xf32>
    %c0_57 = arith.constant 0 : index
    %c0_58 = arith.constant 0 : index
    %c0_59 = arith.constant 0 : index
    %101 = vector.load %arg12[%c0_57, %c0_58, %c0_59] : memref<1x8x32xf32, #tpu.memory_space<vmem>>, vector<1x8x32xf32>
    %102 = vector.shape_cast %101 : vector<1x8x32xf32> to vector<8x32xf32>
    %103 = vector.shape_cast %100 : vector<8x32xf32> to vector<1x8x32xf32>
    tpu.vector_store %arg12[%c0_57, %c0_58, %c0_59], %103 {strides = array<i32>} : memref<1x8x32xf32, #tpu.memory_space<vmem>>, vector<1x8x32xf32>,
    return
  }
  func.func @transform_0(%arg0: i32) -> (i32, i32, i32) {
    %c0_i32 = arith.constant 0 : i32
    %c0_i32_0 = arith.constant 0 : i32
    %c0_i32_1 = arith.constant 0 : i32
    return %arg0, %c0_i32, %c0_i32_0 : i32, i32, i32
  }
  func.func @transform_1(%arg0: i32) -> (i32, i32, i32) {
    %c0_i32 = arith.constant 0 : i32
    %c0_i32_0 = arith.constant 0 : i32
    %c0_i32_1 = arith.constant 0 : i32
    return %arg0, %c0_i32, %c0_i32_0 : i32, i32, i32
  }
  func.func @transform_2(%arg0: i32) -> (i32, i32, i32) {
    %c0_i32 = arith.constant 0 : i32
    %c0_i32_0 = arith.constant 0 : i32
    %c0_i32_1 = arith.constant 0 : i32
    return %arg0, %c0_i32, %c0_i32_0 : i32, i32, i32
  }
  func.func @transform_3(%arg0: i32) -> (i32, i32) {
    %c0_i32 = arith.constant 0 : i32
    %c0_i32_0 = arith.constant 0 : i32
    %c0_i32_1 = arith.constant 0 : i32
    return %c0_i32, %c0_i32_0 : i32, i32
  }
  func.func @transform_4(%arg0: i32) -> (i32, i32) {
    %c0_i32 = arith.constant 0 : i32
    %c0_i32_0 = arith.constant 0 : i32
    %c0_i32_1 = arith.constant 0 : i32
    return %c0_i32, %c0_i32_0 : i32, i32
  }
  func.func @transform_5(%arg0: i32) -> (i32, i32) {
    %c0_i32 = arith.constant 0 : i32
    %c0_i32_0 = arith.constant 0 : i32
    %c0_i32_1 = arith.constant 0 : i32
    return %c0_i32, %c0_i32_0 : i32, i32
  }
  func.func @transform_6(%arg0: i32) -> (i32, i32) {
    %c0_i32 = arith.constant 0 : i32
    %c0_i32_0 = arith.constant 0 : i32
    %c0_i32_1 = arith.constant 0 : i32
    return %c0_i32, %c0_i32_0 : i32, i32
  }
  func.func @transform_7(%arg0: i32) -> (i32, i32) {
    %c0_i32 = arith.constant 0 : i32
    %c0_i32_0 = arith.constant 0 : i32
    %c0_i32_1 = arith.constant 0 : i32
    return %c0_i32, %c0_i32_0 : i32, i32
  }
  func.func @transform_8(%arg0: i32) -> (i32, i32) {
    %c0_i32 = arith.constant 0 : i32
    %c0_i32_0 = arith.constant 0 : i32
    %c0_i32_1 = arith.constant 0 : i32
    return %c0_i32, %c0_i32_0 : i32, i32
  }
  func.func @transform_9(%arg0: i32) -> (i32, i32) {
    %c0_i32 = arith.constant 0 : i32
    %c0_i32_0 = arith.constant 0 : i32
    %c0_i32_1 = arith.constant 0 : i32
    return %c0_i32, %c0_i32_0 : i32, i32
  }
  func.func @transform_10(%arg0: i32) -> (i32, i32) {
    %c0_i32 = arith.constant 0 : i32
    %c0_i32_0 = arith.constant 0 : i32
    %c0_i32_1 = arith.constant 0 : i32
    return %c0_i32, %c0_i32_0 : i32, i32
  }
  func.func @transform_11(%arg0: i32) -> (i32, i32, i32) {
    %c0_i32 = arith.constant 0 : i32
    %c0_i32_0 = arith.constant 0 : i32
    %c0_i32_1 = arith.constant 0 : i32
    return %arg0, %c0_i32, %c0_i32_0 : i32, i32, i32
  }
  func.func @transform_12(%arg0: i32) -> (i32, i32, i32, i32) {
    %c0_i32 = arith.constant 0 : i32
    %c0_i32_0 = arith.constant 0 : i32
    %c0_i32_1 = arith.constant 0 : i32
    %c0_i32_2 = arith.constant 0 : i32
    return %arg0, %c0_i32, %c0_i32_0, %c0_i32_1 : i32, i32, i32, i32
  }
}

</mosaic_0001>

<llo_original>
// kernel: tpu_custom_call.1
$region0: #{tpu_custom_call.1}
  #allocation0 [shape = 'u32[]', space=smem, size = 0x4, offset = 0x4, fixed_abs, tag = 'smem constant byte address 0x4 - core index']
  #allocation1 [shape = 'u32[144,128]{1,0:T(1,128)}', space=vmem, size = 0x12000, scoped, tag = 'internal scratch']
  %s0 = inlined_call_operand.hbm [shape: f32[2,8,32], index: 0, kind: input, shape index: {}]
  %s1 = inlined_call_operand.hbm [shape: f32[2,8,32], index: 1, kind: input, shape index: {}]
  %s2 = inlined_call_operand.hbm [shape: f32[2,8,32], index: 2, kind: input, shape index: {}]
  %s3 = inlined_call_operand.hbm [shape: f32[32,32], index: 3, kind: input, shape index: {}]
  %s4 = inlined_call_operand.vmem [shape: f32[1,32], index: 4, kind: input, shape index: {}]
  %s5 = inlined_call_operand.hbm [shape: f32[32,32], index: 5, kind: input, shape index: {}]
  %s6 = inlined_call_operand.vmem [shape: f32[1,32], index: 6, kind: input, shape index: {}]
  %s7 = inlined_call_operand.hbm [shape: f32[32,32], index: 7, kind: input, shape index: {}]
  %s8 = inlined_call_operand.hbm [shape: f32[1,32], index: 8, kind: input, shape index: {}]
  %s9 = inlined_call_operand.vmem [shape: f32[32,32], index: 9, kind: input, shape index: {}]
  %s10 = inlined_call_operand.vmem [shape: f32[1,32], index: 10, kind: input, shape index: {}]
  %s11 = inlined_call_operand.hbm [shape: f32[2,8,32], index: 11, kind: output, shape index: {0}]
  %s12 = inlined_call_operand.hbm [shape: f32[2,4,8,8], index: 12, kind: output, shape index: {1}]
  %13 = xla_tuple %s11, %s12
  %s14 = sld [smem:[#allocation0]]
  $region113: #{tpu_custom_call.1} parent=0
    _
  %s16 = ssub.s32 1, %s14
  %s17 = scalar_select 0, %s16, %s14
  $region1: #{tpu_custom_call.1} parent=0
    #allocation2 [shape = 'u8[8192]{0}', space=vmem, size = 0x2000, scoped, tag = 'input window, operand 0']
    #allocation3 [shape = 's32[2]{0}', space=sflag, size = 0x8, scoped, tag = 'scoped memory for tpu_custom_call.1']
    #allocation4 [shape = 's32[2]{0}', space=sflag, size = 0x8, scoped, tag = 'scoped memory for tpu_custom_call.1']
    #allocation5 [shape = 'u8[8192]{0}', space=vmem, size = 0x2000, scoped, tag = 'input window, operand 1']
    #allocation6 [shape = 's32[2]{0}', space=sflag, size = 0x8, scoped, tag = 'scoped memory for tpu_custom_call.1']
    #allocation7 [shape = 'u8[8192]{0}', space=vmem, size = 0x2000, scoped, tag = 'input window, operand 2']
    #allocation8 [shape = 'u8[16384]{0}', space=vmem, size = 0x4000, scoped, tag = 'input window, operand 3, single buffered']
    #allocation9 [shape = 's32[1]{0}', space=sflag, size = 0x4, scoped, tag = 'scoped memory for tpu_custom_call.1']
    #allocation10 [shape = 'u8[16384]{0}', space=vmem, size = 0x4000, scoped, tag = 'input window, operand 5, single buffered']
    #allocation11 [shape = 'u8[16384]{0}', space=vmem, size = 0x4000, scoped, tag = 'input window, operand 7, single buffered']
    #allocation12 [shape = 's32[1]{0}', space=sflag, size = 0x4, scoped, tag = 'scoped memory for tpu_custom_call.1']
    #allocation13 [shape = 'u8[512]{0}', space=vmem, size = 0x400, scoped, tag = 'input window, operand 8, single buffered']
    #allocation14 [shape = 'u8[8192]{0}', space=vmem, size = 0x2000, scoped, tag = 'output window, operand 0']
    #allocation15 [shape = 'u8[32768]{0}', space=vmem, size = 0x8000, scoped, tag = 'output window, operand 1']
    #allocation16 [shape = 's32[2]{0}', space=sflag, size = 0x8, scoped, tag = 'scoped memory for tpu_custom_call.1']
    %18 = vsyncpa [#allocation3], 0
    %s19 = scalar_lea.sflag [#allocation3], 1
    %20 = vsyncpa %s19, 0
    %21 = vsyncpa [#allocation6], 0
    %s22 = scalar_lea.sflag [#allocation6], 1
    %23 = vsyncpa %s22, 0
    %24 = vsyncpa [#allocation9], 0
    %25 = vsyncpa [#allocation12], 0
    %26 = vsyncpa [#allocation4], 0
    %s27 = scalar_lea.sflag [#allocation4], 1
    %28 = vsyncpa %s27, 0
    %29 = vsyncpa [#allocation16], 0
    %s30 = scalar_lea.sflag [#allocation16], 1
    %31 = vsyncpa %s30, 0
    loop: start=0, step=1, limit=4
    $region2: #{tpu_custom_call.1} parent=1 // loop_pre_header
      _
    $region3: #{tpu_custom_call.1} parent=1 // loop_header
      %s33 = sphi 0, %s37
      %p34 = scmp.ge.s32.totalorder %s33, 4
      %s43 = sphi 0, %s45
      %s46 = sphi 0, %s43
      %s47 = sphi 0, %s46
      %s63 = sphi 0, %s47
      %s69 = sphi 0, %s71
      %s72 = sphi 0, %s69
      %s73 = sphi 0, %s72
      %s89 = sphi 0, %s73
      %s95 = sphi 0, %s97
      %s98 = sphi 0, %s95
      %s99 = sphi 0, %s98
      %s115 = sphi 0, %s99
      %s119 = sphi 0, %s119
      %s121 = sphi 0, %s119
      %s122 = sphi 0, %s121
      %s136 = sphi 0, %s122
      %s140 = sphi 0, %s140
      %s142 = sphi 0, %s140
      %s143 = sphi 0, %s142
      %s157 = sphi 0, %s143
      %s161 = sphi 0, %s161
      %s163 = sphi 0, %s161
      %s164 = sphi 0, %s163
      %s178 = sphi 0, %s164
      %s182 = sphi 0, %s182
      %s184 = sphi 0, %s182
      %s185 = sphi 0, %s184
      %s199 = sphi 0, %s185
      %s203 = sphi 0, %s203
      %s205 = sphi 0, %s203
      %s206 = sphi 0, %s205
      %s220 = sphi 0, %s206
      %s224 = sphi 0, %s224
      %s226 = sphi 0, %s224
      %s227 = sphi 0, %s226
      %s241 = sphi 0, %s227
      %s245 = sphi 0, %s245
      %s247 = sphi 0, %s245
      %s248 = sphi 0, %s247
      %s262 = sphi 0, %s248
      %s266 = sphi 0, %s266
      %s268 = sphi 0, %s266
      %s269 = sphi 0, %s268
      %s283 = sphi 0, %s269
      %s289 = sphi 0, %s291
      %s292 = sphi 0, %s289
      %s293 = sphi 0, %s292
      %s309 = sphi 0, %s293
      %s315 = sphi 0, %s317
      %s318 = sphi 0, %s315
      %s319 = sphi 0, %s318
      %s335 = sphi 0, %s319
    $region4: #{tpu_custom_call.1} parent=1 // loop_header_branch
      %36 = sbr.rel (%p34) target = $region8
    $region5: #{tpu_custom_call.1} parent=1 // loop_body
      %s38 = ssub.s32 %s33, 1
      %s39 = ssub.s32 %s33, 2
      %s40 = sadd.s32 %s33, 1
      %s41 = ssub.s32 %s33, %s40
      %p42 = scmp.eq.s32.totalorder %s41, 0
      %s44 = sadd.s32 %s43, 1
      %s45 = scalar_select %p42, %s43, %s44
      %p48 = pneg %p42
      %p49 = scmp.eq.s32.totalorder %s33, 1
      %p50 = por %p48, %p49
      %p51 = scmp.ne.s32.totalorder %s43, %s46
      %p52 = scmp.eq.s32.totalorder %s33, 0
      %p53 = por %p51, %p52
      %p54 = scmp.ne.s32.totalorder %s43, %s46
      %p55 = scmp.eq.s32.totalorder %s38, 1
      %p56 = por %p54, %p55
      %p57 = scmp.ne.s32.totalorder %s46, %s47
      %p58 = scmp.eq.s32.totalorder %s38, 0
      %p59 = por %p57, %p58
      %p60 = scmp.ne.s32.totalorder %s46, %s47
      %p61 = scmp.eq.s32.totalorder %s39, 1
      %p62 = por %p60, %p61
      %p64 = scmp.ne.s32.totalorder %s47, %s63
      %p65 = scmp.eq.s32.totalorder %s39, 0
      %p66 = por %p64, %p65
      %s67 = ssub.s32 %s33, %s40
      %p68 = scmp.eq.s32.totalorder %s67, 0
      %s70 = sadd.s32 %s69, 1
      %s71 = scalar_select %p68, %s69, %s70
      %p74 = pneg %p68
      %p75 = scmp.eq.s32.totalorder %s33, 1
      %p76 = por %p74, %p75
      %p77 = scmp.ne.s32.totalorder %s69, %s72
      %p78 = scmp.eq.s32.totalorder %s33, 0
      %p79 = por %p77, %p78
      %p80 = scmp.ne.s32.totalorder %s69, %s72
      %p81 = scmp.eq.s32.totalorder %s38, 1
      %p82 = por %p80, %p81
      %p83 = scmp.ne.s32.totalorder %s72, %s73
      %p84 = scmp.eq.s32.totalorder %s38, 0
      %p85 = por %p83, %p84
      %p86 = scmp.ne.s32.totalorder %s72, %s73
      %p87 = scmp.eq.s32.totalorder %s39, 1
      %p88 = por %p86, %p87
      %p90 = scmp.ne.s32.totalorder %s73, %s89
      %p91 = scmp.eq.s32.totalorder %s39, 0
      %p92 = por %p90, %p91
      %s93 = ssub.s32 %s33, %s40
      %p94 = scmp.eq.s32.totalorder %s93, 0
      %s96 = sadd.s32 %s95, 1
      %s97 = scalar_select %p94, %s95, %s96
      %p100 = pneg %p94
      %p101 = scmp.eq.s32.totalorder %s33, 1
      %p102 = por %p100, %p101
      %p103 = scmp.ne.s32.totalorder %s95, %s98
      %p104 = scmp.eq.s32.totalorder %s33, 0
      %p105 = por %p103, %p104
      %p106 = scmp.ne.s32.totalorder %s95, %s98
      %p107 = scmp.eq.s32.totalorder %s38, 1
      %p108 = por %p106, %p107
      %p109 = scmp.ne.s32.totalorder %s98, %s99
      %p110 = scmp.eq.s32.totalorder %s38, 0
      %p111 = por %p109, %p110
      %p112 = scmp.ne.s32.totalorder %s98, %s99
      %p113 = scmp.eq.s32.totalorder %s39, 1
      %p114 = por %p112, %p113
      %p116 = scmp.ne.s32.totalorder %s99, %s115
      %p117 = scmp.eq.s32.totalorder %s39, 0
      %p118 = por %p116, %p117
      %s120 = sadd.s32 %s119, 1
      %p123 = scmp.eq.s32.totalorder %s33, 1
      %p124 = scmp.ne.s32.totalorder %s119, %s121
      %p125 = scmp.eq.s32.totalorder %s33, 0
      %p126 = por %p124, %p125
      %p127 = scmp.ne.s32.totalorder %s119, %s121
      %p128 = scmp.eq.s32.totalorder %s38, 1
      %p129 = por %p127, %p128
      %p130 = scmp.ne.s32.totalorder %s121, %s122
      %p131 = scmp.eq.s32.totalorder %s38, 0
      %p132 = por %p130, %p131
      %p133 = scmp.ne.s32.totalorder %s121, %s122
      %p134 = scmp.eq.s32.totalorder %s39, 1
      %p135 = por %p133, %p134
      %p137 = scmp.ne.s32.totalorder %s122, %s136
      %p138 = scmp.eq.s32.totalorder %s39, 0
      %p139 = por %p137, %p138
      %s141 = sadd.s32 %s140, 1
      %p144 = scmp.eq.s32.totalorder %s33, 1
      %p145 = scmp.ne.s32.totalorder %s140, %s142
      %p146 = scmp.eq.s32.totalorder %s33, 0
      %p147 = por %p145, %p146
      %p148 = scmp.ne.s32.totalorder %s140, %s142
      %p149 = scmp.eq.s32.totalorder %s38, 1
      %p150 = por %p148, %p149
      %p151 = scmp.ne.s32.totalorder %s142, %s143
      %p152 = scmp.eq.s32.totalorder %s38, 0
      %p153 = por %p151, %p152
      %p154 = scmp.ne.s32.totalorder %s142, %s143
      %p155 = scmp.eq.s32.totalorder %s39, 1
      %p156 = por %p154, %p155
      %p158 = scmp.ne.s32.totalorder %s143, %s157
      %p159 = scmp.eq.s32.totalorder %s39, 0
      %p160 = por %p158, %p159
      %s162 = sadd.s32 %s161, 1
      %p165 = scmp.eq.s32.totalorder %s33, 1
      %p166 = scmp.ne.s32.totalorder %s161, %s163
      %p167 = scmp.eq.s32.totalorder %s33, 0
      %p168 = por %p166, %p167
      %p169 = scmp.ne.s32.totalorder %s161, %s163
      %p170 = scmp.eq.s32.totalorder %s38, 1
      %p171 = por %p169, %p170
      %p172 = scmp.ne.s32.totalorder %s163, %s164
      %p173 = scmp.eq.s32.totalorder %s38, 0
      %p174 = por %p172, %p173
      %p175 = scmp.ne.s32.totalorder %s163, %s164
      %p176 = scmp.eq.s32.totalorder %s39, 1
      %p177 = por %p175, %p176
      %p179 = scmp.ne.s32.totalorder %s164, %s178
      %p180 = scmp.eq.s32.totalorder %s39, 0
      %p181 = por %p179, %p180
      %s183 = sadd.s32 %s182, 1
      %p186 = scmp.eq.s32.totalorder %s33, 1
      %p187 = scmp.ne.s32.totalorder %s182, %s184
      %p188 = scmp.eq.s32.totalorder %s33, 0
      %p189 = por %p187, %p188
      %p190 = scmp.ne.s32.totalorder %s182, %s184
      %p191 = scmp.eq.s32.totalorder %s38, 1
      %p192 = por %p190, %p191
      %p193 = scmp.ne.s32.totalorder %s184, %s185
      %p194 = scmp.eq.s32.totalorder %s38, 0
      %p195 = por %p193, %p194
      %p196 = scmp.ne.s32.totalorder %s184, %s185
      %p197 = scmp.eq.s32.totalorder %s39, 1
      %p198 = por %p196, %p197
      %p200 = scmp.ne.s32.totalorder %s185, %s199
      %p201 = scmp.eq.s32.totalorder %s39, 0
      %p202 = por %p200, %p201
      %s204 = sadd.s32 %s203, 1
      %p207 = scmp.eq.s32.totalorder %s33, 1
      %p208 = scmp.ne.s32.totalorder %s203, %s205
      %p209 = scmp.eq.s32.totalorder %s33, 0
      %p210 = por %p208, %p209
      %p211 = scmp.ne.s32.totalorder %s203, %s205
      %p212 = scmp.eq.s32.totalorder %s38, 1
      %p213 = por %p211, %p212
      %p214 = scmp.ne.s32.totalorder %s205, %s206
      %p215 = scmp.eq.s32.totalorder %s38, 0
      %p216 = por %p214, %p215
      %p217 = scmp.ne.s32.totalorder %s205, %s206
      %p218 = scmp.eq.s32.totalorder %s39, 1
      %p219 = por %p217, %p218
      %p221 = scmp.ne.s32.totalorder %s206, %s220
      %p222 = scmp.eq.s32.totalorder %s39, 0
      %p223 = por %p221, %p222
      %s225 = sadd.s32 %s224, 1
      %p228 = scmp.eq.s32.totalorder %s33, 1
      %p229 = scmp.ne.s32.totalorder %s224, %s226
      %p230 = scmp.eq.s32.totalorder %s33, 0
      %p231 = por %p229, %p230
      %p232 = scmp.ne.s32.totalorder %s224, %s226
      %p233 = scmp.eq.s32.totalorder %s38, 1
      %p234 = por %p232, %p233
      %p235 = scmp.ne.s32.totalorder %s226, %s227
      %p236 = scmp.eq.s32.totalorder %s38, 0
      %p237 = por %p235, %p236
      %p238 = scmp.ne.s32.totalorder %s226, %s227
      %p239 = scmp.eq.s32.totalorder %s39, 1
      %p240 = por %p238, %p239
      %p242 = scmp.ne.s32.totalorder %s227, %s241
      %p243 = scmp.eq.s32.totalorder %s39, 0
      %p244 = por %p242, %p243
      %s246 = sadd.s32 %s245, 1
      %p249 = scmp.eq.s32.totalorder %s33, 1
      %p250 = scmp.ne.s32.totalorder %s245, %s247
      %p251 = scmp.eq.s32.totalorder %s33, 0
      %p252 = por %p250, %p251
      %p253 = scmp.ne.s32.totalorder %s245, %s247
      %p254 = scmp.eq.s32.totalorder %s38, 1
      %p255 = por %p253, %p254
      %p256 = scmp.ne.s32.totalorder %s247, %s248
      %p257 = scmp.eq.s32.totalorder %s38, 0
      %p258 = por %p256, %p257
      %p259 = scmp.ne.s32.totalorder %s247, %s248
      %p260 = scmp.eq.s32.totalorder %s39, 1
      %p261 = por %p259, %p260
      %p263 = scmp.ne.s32.totalorder %s248, %s262
      %p264 = scmp.eq.s32.totalorder %s39, 0
      %p265 = por %p263, %p264
      %s267 = sadd.s32 %s266, 1
      %p270 = scmp.eq.s32.totalorder %s33, 1
      %p271 = scmp.ne.s32.totalorder %s266, %s268
      %p272 = scmp.eq.s32.totalorder %s33, 0
      %p273 = por %p271, %p272
      %p274 = scmp.ne.s32.totalorder %s266, %s268
      %p275 = scmp.eq.s32.totalorder %s38, 1
      %p276 = por %p274, %p275
      %p277 = scmp.ne.s32.totalorder %s268, %s269
      %p278 = scmp.eq.s32.totalorder %s38, 0
      %p279 = por %p277, %p278
      %p280 = scmp.ne.s32.totalorder %s268, %s269
      %p281 = scmp.eq.s32.totalorder %s39, 1
      %p282 = por %p280, %p281
      %p284 = scmp.ne.s32.totalorder %s269, %s283
      %p285 = scmp.eq.s32.totalorder %s39, 0
      %p286 = por %p284, %p285
      %s287 = ssub.s32 %s33, %s40
      %p288 = scmp.eq.s32.totalorder %s287, 0
      %s290 = sadd.s32 %s289, 1
      %s291 = scalar_select %p288, %s289, %s290
      %p294 = pneg %p288
      %p295 = scmp.eq.s32.totalorder %s33, 1
      %p296 = por %p294, %p295
      %p297 = scmp.ne.s32.totalorder %s289, %s292
      %p298 = scmp.eq.s32.totalorder %s33, 0
      %p299 = por %p297, %p298
      %p300 = scmp.ne.s32.totalorder %s289, %s292
      %p301 = scmp.eq.s32.totalorder %s38, 1
      %p302 = por %p300, %p301
      %p303 = scmp.ne.s32.totalorder %s292, %s293
      %p304 = scmp.eq.s32.totalorder %s38, 0
      %p305 = por %p303, %p304
      %p306 = scmp.ne.s32.totalorder %s292, %s293
      %p307 = scmp.eq.s32.totalorder %s39, 1
      %p308 = por %p306, %p307
      %p310 = scmp.ne.s32.totalorder %s293, %s309
      %p311 = scmp.eq.s32.totalorder %s39, 0
      %p312 = por %p310, %p311
      %s313 = ssub.s32 %s33, %s40
      %p314 = scmp.eq.s32.totalorder %s313, 0
      %s316 = sadd.s32 %s315, 1
      %s317 = scalar_select %p314, %s315, %s316
      %p320 = pneg %p314
      %p321 = scmp.eq.s32.totalorder %s33, 1
      %p322 = por %p320, %p321
      %p323 = scmp.ne.s32.totalorder %s315, %s318
      %p324 = scmp.eq.s32.totalorder %s33, 0
      %p325 = por %p323, %p324
      %p326 = scmp.ne.s32.totalorder %s315, %s318
      %p327 = scmp.eq.s32.totalorder %s38, 1
      %p328 = por %p326, %p327
      %p329 = scmp.ne.s32.totalorder %s318, %s319
      %p330 = scmp.eq.s32.totalorder %s38, 0
      %p331 = por %p329, %p330
      %p332 = scmp.ne.s32.totalorder %s318, %s319
      %p333 = scmp.eq.s32.totalorder %s39, 1
      %p334 = por %p332, %p333
      %p336 = scmp.ne.s32.totalorder %s319, %s335
      %p337 = scmp.eq.s32.totalorder %s39, 0
      %p338 = por %p336, %p337
      %p339 = scmp.le.s32.totalorder 1, %s33
      %p340 = scmp.lt.s32.totalorder %s33, 3
      %p341 = pnand %p339, %p340
      %p342 = pneg %p341
      // Predicated region
      $region9: #{tpu_custom_call.1} parent=5 // pred_check
        _
      $region10: #{tpu_custom_call.1} parent=5 // pred_check_branch
        %344 = sbr.rel (%p341) target = $region12
      $region11: #{tpu_custom_call.1} parent=5 // pred_region
        %s345 = ssub.s32 %s33, 1
        // Predicated region
        $region13: #{tpu_custom_call.1} parent=11 // pred_check
          %p346 = pneg %p132
        $region14: #{tpu_custom_call.1} parent=11 // pred_check_branch
          %348 = sbr.rel (%p346) target = $region16
        $region15: #{tpu_custom_call.1} parent=11 // pred_region
          %s350 = ssub.s32 512, 512
          %351 = vsyncadd [#allocation9], %s350
          %s352 = sshll.u32 [#allocation8], 4
          %s353 = int_to_ptr.vmem [resolvable:$true] %s352
          %358 = dma.hbm_to_vmem [thread:$0]  %s3, 512, %s353, [#allocation9], 128, 128, 8
        $region16: #{tpu_custom_call.1} parent=11 // pred_fallthru
          _
        // Predicated region
        $region17: #{tpu_custom_call.1} parent=11 // pred_check
          %p359 = pneg %p153
        $region18: #{tpu_custom_call.1} parent=11 // pred_check_branch
          %361 = sbr.rel (%p359) target = $region20
        $region19: #{tpu_custom_call.1} parent=11 // pred_region
          _
        $region20: #{tpu_custom_call.1} parent=11 // pred_fallthru
          _
        // Predicated region
        $region21: #{tpu_custom_call.1} parent=11 // pred_check
          %p362 = pneg %p174
        $region22: #{tpu_custom_call.1} parent=11 // pred_check_branch
          %364 = sbr.rel (%p362) target = $region24
        $region23: #{tpu_custom_call.1} parent=11 // pred_region
          %s366 = ssub.s32 512, 512
          %367 = vsyncadd [#allocation9], %s366
          %s368 = sshll.u32 [#allocation10], 4
          %s369 = int_to_ptr.vmem [resolvable:$true] %s368
          %374 = dma.hbm_to_vmem [thread:$0]  %s5, 512, %s369, [#allocation9], 128, 128, 8
        $region24: #{tpu_custom_call.1} parent=11 // pred_fallthru
          _
        // Predicated region
        $region25: #{tpu_custom_call.1} parent=11 // pred_check
          %p375 = pneg %p195
        $region26: #{tpu_custom_call.1} parent=11 // pred_check_branch
          %377 = sbr.rel (%p375) target = $region28
        $region27: #{tpu_custom_call.1} parent=11 // pred_region
          _
        $region28: #{tpu_custom_call.1} parent=11 // pred_fallthru
          _
        // Predicated region
        $region29: #{tpu_custom_call.1} parent=11 // pred_check
          %p378 = pneg %p216
        $region30: #{tpu_custom_call.1} parent=11 // pred_check_branch
          %380 = sbr.rel (%p378) target = $region32
        $region31: #{tpu_custom_call.1} parent=11 // pred_region
          %s382 = ssub.s32 512, 512
          %383 = vsyncadd [#allocation12], %s382
          %s384 = sshll.u32 [#allocation11], 4
          %s385 = int_to_ptr.vmem [resolvable:$true] %s384
          %390 = dma.hbm_to_vmem [thread:$0]  %s7, 512, %s385, [#allocation12], 128, 128, 8
        $region32: #{tpu_custom_call.1} parent=11 // pred_fallthru
          _
        // Predicated region
        $region33: #{tpu_custom_call.1} parent=11 // pred_check
          %p391 = pneg %p237
        $region34: #{tpu_custom_call.1} parent=11 // pred_check_branch
          %393 = sbr.rel (%p391) target = $region36
        $region35: #{tpu_custom_call.1} parent=11 // pred_region
          %s395 = ssub.s32 16, 16
          %396 = vsyncadd [#allocation12], %s395
          %s398 = sshll.u32 [#allocation13], 4
          %s399 = int_to_ptr.vmem [resolvable:$true] %s398
          %401 = dma.hbm_to_vmem [thread:$0]  %s8, 16, %s399, [#allocation12]
        $region36: #{tpu_custom_call.1} parent=11 // pred_fallthru
          _
        // Predicated region
        $region37: #{tpu_custom_call.1} parent=11 // pred_check
          %p402 = pneg %p258
        $region38: #{tpu_custom_call.1} parent=11 // pred_check_branch
          %404 = sbr.rel (%p402) target = $region40
        $region39: #{tpu_custom_call.1} parent=11 // pred_region
          _
        $region40: #{tpu_custom_call.1} parent=11 // pred_fallthru
          _
        // Predicated region
        $region41: #{tpu_custom_call.1} parent=11 // pred_check
          %p405 = pneg %p279
        $region42: #{tpu_custom_call.1} parent=11 // pred_check_branch
          %407 = sbr.rel (%p405) target = $region44
        $region43: #{tpu_custom_call.1} parent=11 // pred_region
          _
        $region44: #{tpu_custom_call.1} parent=11 // pred_fallthru
          _
      $region12: #{tpu_custom_call.1} parent=5 // pred_fallthru
        _
      %p408 = scmp.lt.s32.totalorder %s33, 2
      // Predicated region
      $region45: #{tpu_custom_call.1} parent=5 // pred_check
        %p409 = pneg %p408
      $region46: #{tpu_custom_call.1} parent=5 // pred_check_branch
        %411 = sbr.rel (%p409) target = $region48
      $region47: #{tpu_custom_call.1} parent=5 // pred_region
        // Predicated region
        $region49: #{tpu_custom_call.1} parent=47 // pred_check
          %p412 = pneg %p53
        $region50: #{tpu_custom_call.1} parent=47 // pred_check_branch
          %414 = sbr.rel (%p412) target = $region52
        $region51: #{tpu_custom_call.1} parent=47 // pred_region
          %s415 = sand.u32 %s43, 1
          %s416 = scalar_lea.sflag [#allocation3], %s415
          %s417 = sand.u32 %s43, 1
          %s418 = smul.addr %s417, 8
          %s419 = scalar_lea.vmem [#allocation2], %s418
          %s421 = ssub.s32 128, 128
          %422 = vsyncadd %s416, %s421
          %s423 = smul.addr %s33, 128
          %s424 = scalar_lea.hbm %s0, %s423
          %s426 = sshll.u32 %s419, 4
          %s427 = int_to_ptr.vmem [resolvable:$true] %s426
          %429 = dma.hbm_to_vmem [thread:$0]  %s424, 128, %s427, %s416
        $region52: #{tpu_custom_call.1} parent=47 // pred_fallthru
          _
        // Predicated region
        $region53: #{tpu_custom_call.1} parent=47 // pred_check
          %p430 = pneg %p79
        $region54: #{tpu_custom_call.1} parent=47 // pred_check_branch
          %432 = sbr.rel (%p430) target = $region56
        $region55: #{tpu_custom_call.1} parent=47 // pred_region
          %s433 = sand.u32 %s33, 1
          %s434 = scalar_lea.sflag [#allocation6], %s433
          %s435 = sand.u32 %s69, 1
          %s436 = smul.addr %s435, 8
          %s437 = scalar_lea.vmem [#allocation5], %s436
          %s439 = ssub.s32 128, 128
          %440 = vsyncadd %s434, %s439
          %s441 = smul.addr %s33, 128
          %s442 = scalar_lea.hbm %s1, %s441
          %s444 = sshll.u32 %s437, 4
          %s445 = int_to_ptr.vmem [resolvable:$true] %s444
          %447 = dma.hbm_to_vmem [thread:$0]  %s442, 128, %s445, %s434
        $region56: #{tpu_custom_call.1} parent=47 // pred_fallthru
          _
        // Predicated region
        $region57: #{tpu_custom_call.1} parent=47 // pred_check
          %p448 = pneg %p105
        $region58: #{tpu_custom_call.1} parent=47 // pred_check_branch
          %450 = sbr.rel (%p448) target = $region60
        $region59: #{tpu_custom_call.1} parent=47 // pred_region
          %s451 = sand.u32 %s33, 1
          %s452 = scalar_lea.sflag [#allocation6], %s451
          %s453 = sand.u32 %s95, 1
          %s454 = smul.addr %s453, 8
          %s455 = scalar_lea.vmem [#allocation7], %s454
          %s457 = ssub.s32 128, 128
          %458 = vsyncadd %s452, %s457
          %s459 = smul.addr %s33, 128
          %s460 = scalar_lea.hbm %s2, %s459
          %s462 = sshll.u32 %s455, 4
          %s463 = int_to_ptr.vmem [resolvable:$true] %s462
          %465 = dma.hbm_to_vmem [thread:$0]  %s460, 128, %s463, %s452
        $region60: #{tpu_custom_call.1} parent=47 // pred_fallthru
          _
      $region48: #{tpu_custom_call.1} parent=5 // pred_fallthru
        _
      %p466 = scmp.le.s32.totalorder 1, %s33
      %p467 = scmp.lt.s32.totalorder %s33, 3
      %p468 = pnand %p466, %p467
      %p469 = pneg %p468
      // Predicated region
      $region61: #{tpu_custom_call.1} parent=5 // pred_check
        _
      $region62: #{tpu_custom_call.1} parent=5 // pred_check_branch
        %471 = sbr.rel (%p468) target = $region64
      $region63: #{tpu_custom_call.1} parent=5 // pred_region
        %s472 = ssub.s32 %s33, 1
        %s473 = sand.u32 %s46, 1
        %s474 = scalar_lea.sflag [#allocation3], %s473
        %s475 = sand.u32 %s46, 1
        %s476 = smul.addr %s475, 8
        %s477 = scalar_lea.vmem [#allocation2], %s476
        // Predicated region
        $region65: #{tpu_custom_call.1} parent=63 // pred_check
          %p478 = pneg %p59
        $region66: #{tpu_custom_call.1} parent=63 // pred_check_branch
          %480 = sbr.rel (%p478) target = $region68
        $region67: #{tpu_custom_call.1} parent=63 // pred_region
          %481 = dma.done %s474, 128
        $region68: #{tpu_custom_call.1} parent=63 // pred_fallthru
          _
        %s482 = sand.u32 %s38, 1
        %s483 = scalar_lea.sflag [#allocation6], %s482
        %s484 = sand.u32 %s72, 1
        %s485 = smul.addr %s484, 8
        %s486 = scalar_lea.vmem [#allocation5], %s485
        // Predicated region
        $region69: #{tpu_custom_call.1} parent=63 // pred_check
          %p487 = pneg %p85
        $region70: #{tpu_custom_call.1} parent=63 // pred_check_branch
          %489 = sbr.rel (%p487) target = $region72
        $region71: #{tpu_custom_call.1} parent=63 // pred_region
          %490 = dma.done %s483, 128
        $region72: #{tpu_custom_call.1} parent=63 // pred_fallthru
          _
        %s491 = sand.u32 %s38, 1
        %s492 = scalar_lea.sflag [#allocation6], %s491
        %s493 = sand.u32 %s98, 1
        %s494 = smul.addr %s493, 8
        %s495 = scalar_lea.vmem [#allocation7], %s494
        // Predicated region
        $region73: #{tpu_custom_call.1} parent=63 // pred_check
          %p496 = pneg %p111
        $region74: #{tpu_custom_call.1} parent=63 // pred_check_branch
          %498 = sbr.rel (%p496) target = $region76
        $region75: #{tpu_custom_call.1} parent=63 // pred_region
          %499 = dma.done %s492, 128
        $region76: #{tpu_custom_call.1} parent=63 // pred_fallthru
          _
        // Predicated region
        $region77: #{tpu_custom_call.1} parent=63 // pred_check
          %p500 = pneg %p132
        $region78: #{tpu_custom_call.1} parent=63 // pred_check_branch
          %502 = sbr.rel (%p500) target = $region80
        $region79: #{tpu_custom_call.1} parent=63 // pred_region
          %503 = dma.done [#allocation9], 512
        $region80: #{tpu_custom_call.1} parent=63 // pred_fallthru
          _
        // Predicated region
        $region81: #{tpu_custom_call.1} parent=63 // pred_check
          %p504 = pneg %p174
        $region82: #{tpu_custom_call.1} parent=63 // pred_check_branch
          %506 = sbr.rel (%p504) target = $region84
        $region83: #{tpu_custom_call.1} parent=63 // pred_region
          %507 = dma.done [#allocation9], 512
        $region84: #{tpu_custom_call.1} parent=63 // pred_fallthru
          _
        // Predicated region
        $region85: #{tpu_custom_call.1} parent=63 // pred_check
          %p508 = pneg %p216
        $region86: #{tpu_custom_call.1} parent=63 // pred_check_branch
          %510 = sbr.rel (%p508) target = $region88
        $region87: #{tpu_custom_call.1} parent=63 // pred_region
          %511 = dma.done [#allocation12], 512
        $region88: #{tpu_custom_call.1} parent=63 // pred_fallthru
          _
        // Predicated region
        $region89: #{tpu_custom_call.1} parent=63 // pred_check
          %p512 = pneg %p237
        $region90: #{tpu_custom_call.1} parent=63 // pred_check_branch
          %514 = sbr.rel (%p512) target = $region92
        $region91: #{tpu_custom_call.1} parent=63 // pred_region
          %515 = dma.done [#allocation12], 16
        $region92: #{tpu_custom_call.1} parent=63 // pred_fallthru
          _
        %s516 = sand.u32 %s46, 1
        %s517 = scalar_lea.sflag [#allocation3], %s516
        %s518 = sand.u32 %s46, 1
        %s519 = smul.addr %s518, 8
        %s520 = scalar_lea.vmem [#allocation2], %s519
        %p521 = pneg %p59
        %p522 = pneg %p56
        %s523 = sand.u32 %s38, 1
        %s524 = scalar_lea.sflag [#allocation6], %s523
        %s525 = sand.u32 %s72, 1
        %s526 = smul.addr %s525, 8
        %s527 = scalar_lea.vmem [#allocation5], %s526
        %p528 = pneg %p85
        %p529 = pneg %p82
        %s530 = sand.u32 %s38, 1
        %s531 = scalar_lea.sflag [#allocation6], %s530
        %s532 = sand.u32 %s98, 1
        %s533 = smul.addr %s532, 8
        %s534 = scalar_lea.vmem [#allocation7], %s533
        %p535 = pneg %p111
        %p536 = pneg %p108
        %p537 = pneg %p132
        %p538 = pneg %p129
        %p539 = pneg %p153
        %p540 = pneg %p150
        %p541 = pneg %p174
        %p542 = pneg %p171
        %p543 = pneg %p195
        %p544 = pneg %p192
        %p545 = pneg %p216
        %p546 = pneg %p213
        %p547 = pneg %p237
        %p548 = pneg %p234
        %p549 = pneg %p258
        %p550 = pneg %p255
        %p551 = pneg %p279
        %p552 = pneg %p276
        %p553 = pneg %p305
        %p554 = pneg %p302
        %s555 = sand.u32 %s292, 1
        %s556 = scalar_lea.sflag [#allocation4], %s555
        %s557 = sand.u32 %s292, 1
        %s558 = smul.addr %s557, 8
        %s559 = scalar_lea.vmem [#allocation14], %s558
        %p560 = pneg %p331
        %p561 = pneg %p328
        %s562 = sand.u32 %s318, 1
        %s563 = scalar_lea.sflag [#allocation16], %s562
        %s564 = sand.u32 %s318, 1
        %s565 = smul.addr %s564, 32
        %s566 = scalar_lea.vmem [#allocation15], %s565
        %v567 = vld [vmem:[%s477] sm:$0xff]
        %v568 = vld [vmem:[%s486] sm:$0xff]
        %v569 = vld [vmem:[%s495] sm:$0xff]
        %v570 = vld [vmem:[#allocation8] sm:$0xff]
        %v571 = vld [vmem:[#allocation8 + $0x8] sm:$0xff]
        %v572 = vld [vmem:[#allocation8 + $0x10] sm:$0xff]
        %v573 = vld [vmem:[#allocation8 + $0x18] sm:$0xff]
        %v574 = vld [vmem:[%s4] sm:$0x1]
        %v576 = vlaneseq
        %v577 = vshrl.u32 %v576, 7
        %v578 = vsub.s32 0, %v577
        %v579 = vrot.slane %v574, %v578
        %vm581 = vcmask 261120
        %v583 = vsel %vm581, %v567, 0
        %585 = vmatprep.subr.mxu0 0.0
        %586 = vmatpush1.msra.mxu0 %v570
        %587 = vmatprep.subr.mxu0 0.0
        %588 = vmatpush1.msra.mxu0 %v571
        %589 = vmatprep.subr.mxu0 0.0
        %590 = vmatpush1.msra.mxu0 %v572
        %591 = vmatprep.subr.mxu0 0.0
        %592 = vmatpush1.msra.mxu0 %v573
        %593 = vmatprep.subr.mxu0 0.0
        %594 = vmatpush1.msra.mxu0 0.0
        %595 = vmatprep.subr.mxu0 0.0
        %596 = vmatpush1.msra.mxu0 0.0
        %597 = vmatprep.subr.mxu0 0.0
        %598 = vmatpush1.msra.mxu0 0.0
        %599 = vmatprep.subr.mxu0 0.0
        %600 = vmatpush1.msra.mxu0 0.0
        %601 = vmatprep.subr.mxu0 0.0
        %602 = vmatpush1.msra.mxu0 0.0
        %603 = vmatprep.subr.mxu0 0.0
        %604 = vmatpush1.msra.mxu0 0.0
        %605 = vmatprep.subr.mxu0 0.0
        %606 = vmatpush1.msra.mxu0 0.0
        %607 = vmatprep.subr.mxu0 0.0
        %608 = vmatpush1.msra.mxu0 0.0
        %609 = vmatprep.subr.mxu0 0.0
        %610 = vmatpush1.msra.mxu0 0.0
        %611 = vmatprep.subr.mxu0 0.0
        %612 = vmatpush1.msra.mxu0 0.0
        %613 = vmatprep.subr.mxu0 0.0
        %614 = vmatpush1.msra.mxu0 0.0
        %615 = vmatprep.subr.mxu0 0.0
        %616 = vmatpush1.msra.mxu0 0.0
        %617 = vmatprep.subr.mxu0 0.0
        %618 = vmatpush1.msra.mxu0 0.0
        %619 = vmatprep.subr.mxu0 0.0
        %620 = vmatpush1.msra.mxu0 0.0
        %621 = vmatprep.subr.mxu0 0.0
        %622 = vmatpush1.msra.mxu0 0.0
        %623 = vmatprep.subr.mxu0 0.0
        %624 = vmatpush1.msra.mxu0 0.0
        %625 = vmatprep.subr.mxu0 0.0
        %626 = vmatpush1.msra.mxu0 0.0
        %627 = vmatprep.subr.mxu0 0.0
        %628 = vmatpush1.msra.mxu0 0.0
        %629 = vmatprep.subr.mxu0 0.0
        %630 = vmatpush1.msra.mxu0 0.0
        %631 = vmatprep.subr.mxu0 0.0
        %632 = vmatpush1.msra.mxu0 0.0
        %633 = vmatprep.subr.mxu0 0.0
        %634 = vmatpush1.msra.mxu0 0.0
        %635 = vmatprep.subr.mxu0 0.0
        %636 = vmatpush1.msra.mxu0 0.0
        %637 = vmatprep.subr.mxu0 0.0
        %638 = vmatpush1.msra.mxu0 0.0
        %639 = vmatprep.subr.mxu0 0.0
        %640 = vmatpush1.msra.mxu0 0.0
        %641 = vmatprep.subr.mxu0 0.0
        %642 = vmatpush1.msra.mxu0 0.0
        %643 = vmatprep.subr.mxu0 0.0
        %644 = vmatpush1.msra.mxu0 0.0
        %645 = vmatprep.subr.mxu0 0.0
        %646 = vmatpush1.msra.mxu0 0.0
        %647 = vmatprep.subr.mxu0 0.0
        %648 = vmatpush1.msra.mxu0 0.0
        %649 = vmatprep.mubr.f32.mxu0 0.0
        %650 = vmatmul.mubr.f32.gmra.mrb[0].mxu0 %v583
        %v651 = vpop.f32.mrb[0].mxu0
        %v652 = vadd.f32 %v579, %v651
        %v653 = vpop.f32.mrb[0].mxu0
        %654 = vdwg.mxu0
        %v655 = vmul.f32 %v652, 0.35355338
        %v656 = vld [vmem:[#allocation10] sm:$0xff]
        %v657 = vld [vmem:[#allocation10 + $0x8] sm:$0xff]
        %v658 = vld [vmem:[#allocation10 + $0x10] sm:$0xff]
        %v659 = vld [vmem:[#allocation10 + $0x18] sm:$0xff]
        %v660 = vld [vmem:[%s6] sm:$0x1]
        %v662 = vlaneseq
        %v663 = vshrl.u32 %v662, 7
        %v664 = vsub.s32 0, %v663
        %v665 = vrot.slane %v660, %v664
        %v668 = vsel %vm581, %v568, 0
        %670 = vmatprep.subr.mxu0 0.0
        %671 = vmatpush1.msra.mxu0 %v656
        %672 = vmatprep.subr.mxu0 0.0
        %673 = vmatpush1.msra.mxu0 %v657
        %674 = vmatprep.subr.mxu0 0.0
        %675 = vmatpush1.msra.mxu0 %v658
        %676 = vmatprep.subr.mxu0 0.0
        %677 = vmatpush1.msra.mxu0 %v659
        %678 = vmatprep.subr.mxu0 0.0
        %679 = vmatpush1.msra.mxu0 0.0
        %680 = vmatprep.subr.mxu0 0.0
        %681 = vmatpush1.msra.mxu0 0.0
        %682 = vmatprep.subr.mxu0 0.0
        %683 = vmatpush1.msra.mxu0 0.0
        %684 = vmatprep.subr.mxu0 0.0
        %685 = vmatpush1.msra.mxu0 0.0
        %686 = vmatprep.subr.mxu0 0.0
        %687 = vmatpush1.msra.mxu0 0.0
        %688 = vmatprep.subr.mxu0 0.0
        %689 = vmatpush1.msra.mxu0 0.0
        %690 = vmatprep.subr.mxu0 0.0
        %691 = vmatpush1.msra.mxu0 0.0
        %692 = vmatprep.subr.mxu0 0.0
        %693 = vmatpush1.msra.mxu0 0.0
        %694 = vmatprep.subr.mxu0 0.0
        %695 = vmatpush1.msra.mxu0 0.0
        %696 = vmatprep.subr.mxu0 0.0
        %697 = vmatpush1.msra.mxu0 0.0
        %698 = vmatprep.subr.mxu0 0.0
        %699 = vmatpush1.msra.mxu0 0.0
        %700 = vmatprep.subr.mxu0 0.0
        %701 = vmatpush1.msra.mxu0 0.0
        %702 = vmatprep.subr.mxu0 0.0
        %703 = vmatpush1.msra.mxu0 0.0
        %704 = vmatprep.subr.mxu0 0.0
        %705 = vmatpush1.msra.mxu0 0.0
        %706 = vmatprep.subr.mxu0 0.0
        %707 = vmatpush1.msra.mxu0 0.0
        %708 = vmatprep.subr.mxu0 0.0
        %709 = vmatpush1.msra.mxu0 0.0
        %710 = vmatprep.subr.mxu0 0.0
        %711 = vmatpush1.msra.mxu0 0.0
        %712 = vmatprep.subr.mxu0 0.0
        %713 = vmatpush1.msra.mxu0 0.0
        %714 = vmatprep.subr.mxu0 0.0
        %715 = vmatpush1.msra.mxu0 0.0
        %716 = vmatprep.subr.mxu0 0.0
        %717 = vmatpush1.msra.mxu0 0.0
        %718 = vmatprep.subr.mxu0 0.0
        %719 = vmatpush1.msra.mxu0 0.0
        %720 = vmatprep.subr.mxu0 0.0
        %721 = vmatpush1.msra.mxu0 0.0
        %722 = vmatprep.subr.mxu0 0.0
        %723 = vmatpush1.msra.mxu0 0.0
        %724 = vmatprep.subr.mxu0 0.0
        %725 = vmatpush1.msra.mxu0 0.0
        %726 = vmatprep.subr.mxu0 0.0
        %727 = vmatpush1.msra.mxu0 0.0
        %728 = vmatprep.subr.mxu0 0.0
        %729 = vmatpush1.msra.mxu0 0.0
        %730 = vmatprep.subr.mxu0 0.0
        %731 = vmatpush1.msra.mxu0 0.0
        %732 = vmatprep.subr.mxu0 0.0
        %733 = vmatpush1.msra.mxu0 0.0
        %734 = vmatprep.mubr.f32.mxu0 0.0
        %735 = vmatmul.mubr.f32.gmra.mrb[0].mxu0 %v668
        %v736 = vpop.f32.mrb[0].mxu0
        %v737 = vadd.f32 %v665, %v736
        %v738 = vpop.f32.mrb[0].mxu0
        %739 = vdwg.mxu0
        %v740 = vld [vmem:[#allocation11] sm:$0xff]
        %v741 = vld [vmem:[#allocation11 + $0x8] sm:$0xff]
        %v742 = vld [vmem:[#allocation11 + $0x10] sm:$0xff]
        %v743 = vld [vmem:[#allocation11 + $0x18] sm:$0xff]
        %v744 = vld [vmem:[#allocation13] sm:$0x1]
        %v746 = vlaneseq
        %v747 = vshrl.u32 %v746, 7
        %v748 = vsub.s32 0, %v747
        %v749 = vrot.slane %v744, %v748
        %v752 = vsel %vm581, %v569, 0
        %754 = vmatprep.subr.mxu0 0.0
        %755 = vmatpush1.msra.mxu0 %v740
        %756 = vmatprep.subr.mxu0 0.0
        %757 = vmatpush1.msra.mxu0 %v741
        %758 = vmatprep.subr.mxu0 0.0
        %759 = vmatpush1.msra.mxu0 %v742
        %760 = vmatprep.subr.mxu0 0.0
        %761 = vmatpush1.msra.mxu0 %v743
        %762 = vmatprep.subr.mxu0 0.0
        %763 = vmatpush1.msra.mxu0 0.0
        %764 = vmatprep.subr.mxu0 0.0
        %765 = vmatpush1.msra.mxu0 0.0
        %766 = vmatprep.subr.mxu0 0.0
        %767 = vmatpush1.msra.mxu0 0.0
        %768 = vmatprep.subr.mxu0 0.0
        %769 = vmatpush1.msra.mxu0 0.0
        %770 = vmatprep.subr.mxu0 0.0
        %771 = vmatpush1.msra.mxu0 0.0
        %772 = vmatprep.subr.mxu0 0.0
        %773 = vmatpush1.msra.mxu0 0.0
        %774 = vmatprep.subr.mxu0 0.0
        %775 = vmatpush1.msra.mxu0 0.0
        %776 = vmatprep.subr.mxu0 0.0
        %777 = vmatpush1.msra.mxu0 0.0
        %778 = vmatprep.subr.mxu0 0.0
        %779 = vmatpush1.msra.mxu0 0.0
        %780 = vmatprep.subr.mxu0 0.0
        %781 = vmatpush1.msra.mxu0 0.0
        %782 = vmatprep.subr.mxu0 0.0
        %783 = vmatpush1.msra.mxu0 0.0
        %784 = vmatprep.subr.mxu0 0.0
        %785 = vmatpush1.msra.mxu0 0.0
        %786 = vmatprep.subr.mxu0 0.0
        %787 = vmatpush1.msra.mxu0 0.0
        %788 = vmatprep.subr.mxu0 0.0
        %789 = vmatpush1.msra.mxu0 0.0
        %790 = vmatprep.subr.mxu0 0.0
        %791 = vmatpush1.msra.mxu0 0.0
        %792 = vmatprep.subr.mxu0 0.0
        %793 = vmatpush1.msra.mxu0 0.0
        %794 = vmatprep.subr.mxu0 0.0
        %795 = vmatpush1.msra.mxu0 0.0
        %796 = vmatprep.subr.mxu0 0.0
        %797 = vmatpush1.msra.mxu0 0.0
        %798 = vmatprep.subr.mxu0 0.0
        %799 = vmatpush1.msra.mxu0 0.0
        %800 = vmatprep.subr.mxu0 0.0
        %801 = vmatpush1.msra.mxu0 0.0
        %802 = vmatprep.subr.mxu0 0.0
        %803 = vmatpush1.msra.mxu0 0.0
        %804 = vmatprep.subr.mxu0 0.0
        %805 = vmatpush1.msra.mxu0 0.0
        %806 = vmatprep.subr.mxu0 0.0
        %807 = vmatpush1.msra.mxu0 0.0
        %808 = vmatprep.subr.mxu0 0.0
        %809 = vmatpush1.msra.mxu0 0.0
        %810 = vmatprep.subr.mxu0 0.0
        %811 = vmatpush1.msra.mxu0 0.0
        %812 = vmatprep.subr.mxu0 0.0
        %813 = vmatpush1.msra.mxu0 0.0
        %814 = vmatprep.subr.mxu0 0.0
        %815 = vmatpush1.msra.mxu0 0.0
        %816 = vmatprep.subr.mxu0 0.0
        %817 = vmatpush1.msra.mxu0 0.0
        %818 = vmatprep.mubr.f32.mxu0 0.0
        %819 = vmatmul.mubr.f32.gmra.mrb[0].mxu0 %v752
        %v820 = vpop.f32.mrb[0].mxu0
        %v821 = vadd.f32 %v749, %v820
        %v822 = vpop.f32.mrb[0].mxu0
        %823 = vdwg.mxu0
        %vm824 = vcmask 64512
        %v826 = vsel %vm824, %v655, 0
        %v829 = vsel %vm824, %v737, 0
        %831 = vmatprep.subr.mxu0 0.0
        %832 = vmatpush1.xpose.msra.mxu0 %v829
        %833 = vmatprep.subr.mxu0 0.0
        %834 = vmatpush1.xpose.msra.mxu0 0.0
        %835 = vmatprep.subr.mxu0 0.0
        %836 = vmatpush1.xpose.msra.mxu0 0.0
        %837 = vmatprep.subr.mxu0 0.0
        %838 = vmatpush1.xpose.msra.mxu0 0.0
        %839 = vmatprep.subr.mxu0 0.0
        %840 = vmatpush1.xpose.msra.mxu0 0.0
        %841 = vmatprep.subr.mxu0 0.0
        %842 = vmatpush1.xpose.msra.mxu0 0.0
        %843 = vmatprep.subr.mxu0 0.0
        %844 = vmatpush1.xpose.msra.mxu0 0.0
        %845 = vmatprep.subr.mxu0 0.0
        %846 = vmatpush1.xpose.msra.mxu0 0.0
        %847 = vmatprep.subr.mxu0 0.0
        %848 = vmatpush1.xpose.msra.mxu0 0.0
        %849 = vmatprep.subr.mxu0 0.0
        %850 = vmatpush1.xpose.msra.mxu0 0.0
        %851 = vmatprep.subr.mxu0 0.0
        %852 = vmatpush1.xpose.msra.mxu0 0.0
        %853 = vmatprep.subr.mxu0 0.0
        %854 = vmatpush1.xpose.msra.mxu0 0.0
        %855 = vmatprep.subr.mxu0 0.0
        %856 = vmatpush1.xpose.msra.mxu0 0.0
        %857 = vmatprep.subr.mxu0 0.0
        %858 = vmatpush1.xpose.msra.mxu0 0.0
        %859 = vmatprep.subr.mxu0 0.0
        %860 = vmatpush1.xpose.msra.mxu0 0.0
        %861 = vmatprep.subr.mxu0 0.0
        %862 = vmatpush1.xpose.msra.mxu0 0.0
        %863 = vmatprep.subr.mxu0 0.0
        %864 = vmatpush1.xpose.msra.mxu0 0.0
        %865 = vmatprep.subr.mxu0 0.0
        %866 = vmatpush1.xpose.msra.mxu0 0.0
        %867 = vmatprep.subr.mxu0 0.0
        %868 = vmatpush1.xpose.msra.mxu0 0.0
        %869 = vmatprep.subr.mxu0 0.0
        %870 = vmatpush1.xpose.msra.mxu0 0.0
        %871 = vmatprep.subr.mxu0 0.0
        %872 = vmatpush1.xpose.msra.mxu0 0.0
        %873 = vmatprep.subr.mxu0 0.0
        %874 = vmatpush1.xpose.msra.mxu0 0.0
        %875 = vmatprep.subr.mxu0 0.0
        %876 = vmatpush1.xpose.msra.mxu0 0.0
        %877 = vmatprep.subr.mxu0 0.0
        %878 = vmatpush1.xpose.msra.mxu0 0.0
        %879 = vmatprep.subr.mxu0 0.0
        %880 = vmatpush1.xpose.msra.mxu0 0.0
        %881 = vmatprep.subr.mxu0 0.0
        %882 = vmatpush1.xpose.msra.mxu0 0.0
        %883 = vmatprep.subr.mxu0 0.0
        %884 = vmatpush1.xpose.msra.mxu0 0.0
        %885 = vmatprep.subr.mxu0 0.0
        %886 = vmatpush1.xpose.msra.mxu0 0.0
        %887 = vmatprep.subr.mxu0 0.0
        %888 = vmatpush1.xpose.msra.mxu0 0.0
        %889 = vmatprep.subr.mxu0 0.0
        %890 = vmatpush1.xpose.msra.mxu0 0.0
        %891 = vmatprep.subr.mxu0 0.0
        %892 = vmatpush1.xpose.msra.mxu0 0.0
        %893 = vmatprep.subr.mxu0 0.0
        %894 = vmatpush1.xpose.msra.mxu0 0.0
        %895 = vmatprep.mubr.f32.mxu0 0.0
        %896 = vmatmul.mubr.f32.gmra.mrb[0].mxu0 %v826
        %v897 = vpop.f32.mrb[0].mxu0
        %v898 = vadd.f32 0.0, %v897
        %v899 = vpop.f32.mrb[0].mxu0
        %900 = vdwg.mxu0
        %v901 = vsel %vm824, %v898, -inf
        %902 = vmax.xlane.f32.xlu0 %v901
        %v903 = vpop.xlane.xlu0 %902
        %v904 = vsub.f32 %v898, %v903
        %v905 = vmul.f32 %v904, 1.442695
        %v906 = vpow.pop %v905
        %v907 = vsel %vm824, %v906, 0.0
        %908 = vadd.xlane.f32.xlu0 %v907
        %v909 = vpop.xlane.xlu0 %908
        %v910 = vrcp.pop %v909
        %v911 = vmul.f32 %v906, %v910
        %912 = vst.msk [vmem:[%s566] sm:$0xff] %vm824, %v911
        %v914 = vsel %vm824, %v911, 0
        %916 = vmatprep.subr.mxu0 0.0
        %917 = vmatpush1.msra.mxu0 %v821
        %918 = vmatprep.subr.mxu0 0.0
        %919 = vmatpush1.msra.mxu0 0.0
        %920 = vmatprep.subr.mxu0 0.0
        %921 = vmatpush1.msra.mxu0 0.0
        %922 = vmatprep.subr.mxu0 0.0
        %923 = vmatpush1.msra.mxu0 0.0
        %924 = vmatprep.subr.mxu0 0.0
        %925 = vmatpush1.msra.mxu0 0.0
        %926 = vmatprep.subr.mxu0 0.0
        %927 = vmatpush1.msra.mxu0 0.0
        %928 = vmatprep.subr.mxu0 0.0
        %929 = vmatpush1.msra.mxu0 0.0
        %930 = vmatprep.subr.mxu0 0.0
        %931 = vmatpush1.msra.mxu0 0.0
        %932 = vmatprep.subr.mxu0 0.0
        %933 = vmatpush1.msra.mxu0 0.0
        %934 = vmatprep.subr.mxu0 0.0
        %935 = vmatpush1.msra.mxu0 0.0
        %936 = vmatprep.subr.mxu0 0.0
        %937 = vmatpush1.msra.mxu0 0.0
        %938 = vmatprep.subr.mxu0 0.0
        %939 = vmatpush1.msra.mxu0 0.0
        %940 = vmatprep.subr.mxu0 0.0
        %941 = vmatpush1.msra.mxu0 0.0
        %942 = vmatprep.subr.mxu0 0.0
        %943 = vmatpush1.msra.mxu0 0.0
        %944 = vmatprep.subr.mxu0 0.0
        %945 = vmatpush1.msra.mxu0 0.0
        %946 = vmatprep.subr.mxu0 0.0
        %947 = vmatpush1.msra.mxu0 0.0
        %948 = vmatprep.subr.mxu0 0.0
        %949 = vmatpush1.msra.mxu0 0.0
        %950 = vmatprep.subr.mxu0 0.0
        %951 = vmatpush1.msra.mxu0 0.0
        %952 = vmatprep.subr.mxu0 0.0
        %953 = vmatpush1.msra.mxu0 0.0
        %954 = vmatprep.subr.mxu0 0.0
        %955 = vmatpush1.msra.mxu0 0.0
        %956 = vmatprep.subr.mxu0 0.0
        %957 = vmatpush1.msra.mxu0 0.0
        %958 = vmatprep.subr.mxu0 0.0
        %959 = vmatpush1.msra.mxu0 0.0
        %960 = vmatprep.subr.mxu0 0.0
        %961 = vmatpush1.msra.mxu0 0.0
        %962 = vmatprep.subr.mxu0 0.0
        %963 = vmatpush1.msra.mxu0 0.0
        %964 = vmatprep.subr.mxu0 0.0
        %965 = vmatpush1.msra.mxu0 0.0
        %966 = vmatprep.subr.mxu0 0.0
        %967 = vmatpush1.msra.mxu0 0.0
        %968 = vmatprep.subr.mxu0 0.0
        %969 = vmatpush1.msra.mxu0 0.0
        %970 = vmatprep.subr.mxu0 0.0
        %971 = vmatpush1.msra.mxu0 0.0
        %972 = vmatprep.subr.mxu0 0.0
        %973 = vmatpush1.msra.mxu0 0.0
        %974 = vmatprep.subr.mxu0 0.0
        %975 = vmatpush1.msra.mxu0 0.0
        %976 = vmatprep.subr.mxu0 0.0
        %977 = vmatpush1.msra.mxu0 0.0
        %978 = vmatprep.subr.mxu0 0.0
        %979 = vmatpush1.msra.mxu0 0.0
        %980 = vmatprep.mubr.f32.mxu0 0.0
        %981 = vmatmul.mubr.f32.gmra.mrb[0].mxu0 %v914
        %v982 = vpop.f32.mrb[0].mxu0
        %v983 = vadd.f32 0.0, %v982
        %v984 = vpop.f32.mrb[0].mxu0
        %985 = vdwg.mxu0
        %986 = vrot.lane.b32.xlu0 %v655, 120
        %v987 = vpop.permute.xlu0 %986
        %988 = vrot.lane.b32.xlu0 %v737, 120
        %v989 = vpop.permute.xlu0 %988
        %v990 = vsel %vm824, %v987, 0
        %v992 = vsel %vm824, %v989, 0
        %994 = vmatprep.subr.mxu0 0.0
        %995 = vmatpush1.xpose.msra.mxu0 %v992
        %996 = vmatprep.subr.mxu0 0.0
        %997 = vmatpush1.xpose.msra.mxu0 0.0
        %998 = vmatprep.subr.mxu0 0.0
        %999 = vmatpush1.xpose.msra.mxu0 0.0
        %1000 = vmatprep.subr.mxu0 0.0
        %1001 = vmatpush1.xpose.msra.mxu0 0.0
        %1002 = vmatprep.subr.mxu0 0.0
        %1003 = vmatpush1.xpose.msra.mxu0 0.0
        %1004 = vmatprep.subr.mxu0 0.0
        %1005 = vmatpush1.xpose.msra.mxu0 0.0
        %1006 = vmatprep.subr.mxu0 0.0
        %1007 = vmatpush1.xpose.msra.mxu0 0.0
        %1008 = vmatprep.subr.mxu0 0.0
        %1009 = vmatpush1.xpose.msra.mxu0 0.0
        %1010 = vmatprep.subr.mxu0 0.0
        %1011 = vmatpush1.xpose.msra.mxu0 0.0
        %1012 = vmatprep.subr.mxu0 0.0
        %1013 = vmatpush1.xpose.msra.mxu0 0.0
        %1014 = vmatprep.subr.mxu0 0.0
        %1015 = vmatpush1.xpose.msra.mxu0 0.0
        %1016 = vmatprep.subr.mxu0 0.0
        %1017 = vmatpush1.xpose.msra.mxu0 0.0
        %1018 = vmatprep.subr.mxu0 0.0
        %1019 = vmatpush1.xpose.msra.mxu0 0.0
        %1020 = vmatprep.subr.mxu0 0.0
        %1021 = vmatpush1.xpose.msra.mxu0 0.0
        %1022 = vmatprep.subr.mxu0 0.0
        %1023 = vmatpush1.xpose.msra.mxu0 0.0
        %1024 = vmatprep.subr.mxu0 0.0
        %1025 = vmatpush1.xpose.msra.mxu0 0.0
        %1026 = vmatprep.subr.mxu0 0.0
        %1027 = vmatpush1.xpose.msra.mxu0 0.0
        %1028 = vmatprep.subr.mxu0 0.0
        %1029 = vmatpush1.xpose.msra.mxu0 0.0
        %1030 = vmatprep.subr.mxu0 0.0
        %1031 = vmatpush1.xpose.msra.mxu0 0.0
        %1032 = vmatprep.subr.mxu0 0.0
        %1033 = vmatpush1.xpose.msra.mxu0 0.0
        %1034 = vmatprep.subr.mxu0 0.0
        %1035 = vmatpush1.xpose.msra.mxu0 0.0
        %1036 = vmatprep.subr.mxu0 0.0
        %1037 = vmatpush1.xpose.msra.mxu0 0.0
        %1038 = vmatprep.subr.mxu0 0.0
        %1039 = vmatpush1.xpose.msra.mxu0 0.0
        %1040 = vmatprep.subr.mxu0 0.0
        %1041 = vmatpush1.xpose.msra.mxu0 0.0
        %1042 = vmatprep.subr.mxu0 0.0
        %1043 = vmatpush1.xpose.msra.mxu0 0.0
        %1044 = vmatprep.subr.mxu0 0.0
        %1045 = vmatpush1.xpose.msra.mxu0 0.0
        %1046 = vmatprep.subr.mxu0 0.0
        %1047 = vmatpush1.xpose.msra.mxu0 0.0
        %1048 = vmatprep.subr.mxu0 0.0
        %1049 = vmatpush1.xpose.msra.mxu0 0.0
        %1050 = vmatprep.subr.mxu0 0.0
        %1051 = vmatpush1.xpose.msra.mxu0 0.0
        %1052 = vmatprep.subr.mxu0 0.0
        %1053 = vmatpush1.xpose.msra.mxu0 0.0
        %1054 = vmatprep.subr.mxu0 0.0
        %1055 = vmatpush1.xpose.msra.mxu0 0.0
        %1056 = vmatprep.subr.mxu0 0.0
        %1057 = vmatpush1.xpose.msra.mxu0 0.0
        %1058 = vmatprep.mubr.f32.mxu0 0.0
        %1059 = vmatmul.mubr.f32.gmra.mrb[0].mxu0 %v990
        %v1060 = vpop.f32.mrb[0].mxu0
        %v1061 = vadd.f32 0.0, %v1060
        %v1062 = vpop.f32.mrb[0].mxu0
        %1063 = vdwg.mxu0
        %v1064 = vsel %vm824, %v1061, -inf
        %1065 = vmax.xlane.f32.xlu0 %v1064
        %v1066 = vpop.xlane.xlu0 %1065
        %v1067 = vsub.f32 %v1061, %v1066
        %v1068 = vmul.f32 %v1067, 1.442695
        %v1069 = vpow.pop %v1068
        %v1070 = vsel %vm824, %v1069, 0.0
        %1071 = vadd.xlane.f32.xlu0 %v1070
        %v1072 = vpop.xlane.xlu0 %1071
        %v1073 = vrcp.pop %v1072
        %v1074 = vmul.f32 %v1069, %v1073
        %s1075 = scalar_lea.vmem %s566, 8 [#allocation15]
        %1076 = vst.msk [vmem:[%s1075] sm:$0xff] %vm824, %v1074
        %1078 = vrot.lane.b32.xlu0 %v821, 120
        %v1079 = vpop.permute.xlu0 %1078
        %v1082 = vsel %vm824, %v1074, 0
        %1084 = vmatprep.subr.mxu0 0.0
        %1085 = vmatpush1.msra.mxu0 %v1079
        %1086 = vmatprep.subr.mxu0 0.0
        %1087 = vmatpush1.msra.mxu0 0.0
        %1088 = vmatprep.subr.mxu0 0.0
        %1089 = vmatpush1.msra.mxu0 0.0
        %1090 = vmatprep.subr.mxu0 0.0
        %1091 = vmatpush1.msra.mxu0 0.0
        %1092 = vmatprep.subr.mxu0 0.0
        %1093 = vmatpush1.msra.mxu0 0.0
        %1094 = vmatprep.subr.mxu0 0.0
        %1095 = vmatpush1.msra.mxu0 0.0
        %1096 = vmatprep.subr.mxu0 0.0
        %1097 = vmatpush1.msra.mxu0 0.0
        %1098 = vmatprep.subr.mxu0 0.0
        %1099 = vmatpush1.msra.mxu0 0.0
        %1100 = vmatprep.subr.mxu0 0.0
        %1101 = vmatpush1.msra.mxu0 0.0
        %1102 = vmatprep.subr.mxu0 0.0
        %1103 = vmatpush1.msra.mxu0 0.0
        %1104 = vmatprep.subr.mxu0 0.0
        %1105 = vmatpush1.msra.mxu0 0.0
        %1106 = vmatprep.subr.mxu0 0.0
        %1107 = vmatpush1.msra.mxu0 0.0
        %1108 = vmatprep.subr.mxu0 0.0
        %1109 = vmatpush1.msra.mxu0 0.0
        %1110 = vmatprep.subr.mxu0 0.0
        %1111 = vmatpush1.msra.mxu0 0.0
        %1112 = vmatprep.subr.mxu0 0.0
        %1113 = vmatpush1.msra.mxu0 0.0
        %1114 = vmatprep.subr.mxu0 0.0
        %1115 = vmatpush1.msra.mxu0 0.0
        %1116 = vmatprep.subr.mxu0 0.0
        %1117 = vmatpush1.msra.mxu0 0.0
        %1118 = vmatprep.subr.mxu0 0.0
        %1119 = vmatpush1.msra.mxu0 0.0
        %1120 = vmatprep.subr.mxu0 0.0
        %1121 = vmatpush1.msra.mxu0 0.0
        %1122 = vmatprep.subr.mxu0 0.0
        %1123 = vmatpush1.msra.mxu0 0.0
        %1124 = vmatprep.subr.mxu0 0.0
        %1125 = vmatpush1.msra.mxu0 0.0
        %1126 = vmatprep.subr.mxu0 0.0
        %1127 = vmatpush1.msra.mxu0 0.0
        %1128 = vmatprep.subr.mxu0 0.0
        %1129 = vmatpush1.msra.mxu0 0.0
        %1130 = vmatprep.subr.mxu0 0.0
        %1131 = vmatpush1.msra.mxu0 0.0
        %1132 = vmatprep.subr.mxu0 0.0
        %1133 = vmatpush1.msra.mxu0 0.0
        %1134 = vmatprep.subr.mxu0 0.0
        %1135 = vmatpush1.msra.mxu0 0.0
        %1136 = vmatprep.subr.mxu0 0.0
        %1137 = vmatpush1.msra.mxu0 0.0
        %1138 = vmatprep.subr.mxu0 0.0
        %1139 = vmatpush1.msra.mxu0 0.0
        %1140 = vmatprep.subr.mxu0 0.0
        %1141 = vmatpush1.msra.mxu0 0.0
        %1142 = vmatprep.subr.mxu0 0.0
        %1143 = vmatpush1.msra.mxu0 0.0
        %1144 = vmatprep.subr.mxu0 0.0
        %1145 = vmatpush1.msra.mxu0 0.0
        %1146 = vmatprep.subr.mxu0 0.0
        %1147 = vmatpush1.msra.mxu0 0.0
        %1148 = vmatprep.mubr.f32.mxu0 0.0
        %1149 = vmatmul.mubr.f32.gmra.mrb[0].mxu0 %v1082
        %v1150 = vpop.f32.mrb[0].mxu0
        %v1151 = vadd.f32 0.0, %v1150
        %v1152 = vpop.f32.mrb[0].mxu0
        %1153 = vdwg.mxu0
        %1154 = vrot.lane.b32.xlu0 %v655, 112
        %v1155 = vpop.permute.xlu0 %1154
        %1156 = vrot.lane.b32.xlu0 %v737, 112
        %v1157 = vpop.permute.xlu0 %1156
        %v1158 = vsel %vm824, %v1155, 0
        %v1160 = vsel %vm824, %v1157, 0
        %1162 = vmatprep.subr.mxu0 0.0
        %1163 = vmatpush1.xpose.msra.mxu0 %v1160
        %1164 = vmatprep.subr.mxu0 0.0
        %1165 = vmatpush1.xpose.msra.mxu0 0.0
        %1166 = vmatprep.subr.mxu0 0.0
        %1167 = vmatpush1.xpose.msra.mxu0 0.0
        %1168 = vmatprep.subr.mxu0 0.0
        %1169 = vmatpush1.xpose.msra.mxu0 0.0
        %1170 = vmatprep.subr.mxu0 0.0
        %1171 = vmatpush1.xpose.msra.mxu0 0.0
        %1172 = vmatprep.subr.mxu0 0.0
        %1173 = vmatpush1.xpose.msra.mxu0 0.0
        %1174 = vmatprep.subr.mxu0 0.0
        %1175 = vmatpush1.xpose.msra.mxu0 0.0
        %1176 = vmatprep.subr.mxu0 0.0
        %1177 = vmatpush1.xpose.msra.mxu0 0.0
        %1178 = vmatprep.subr.mxu0 0.0
        %1179 = vmatpush1.xpose.msra.mxu0 0.0
        %1180 = vmatprep.subr.mxu0 0.0
        %1181 = vmatpush1.xpose.msra.mxu0 0.0
        %1182 = vmatprep.subr.mxu0 0.0
        %1183 = vmatpush1.xpose.msra.mxu0 0.0
        %1184 = vmatprep.subr.mxu0 0.0
        %1185 = vmatpush1.xpose.msra.mxu0 0.0
        %1186 = vmatprep.subr.mxu0 0.0
        %1187 = vmatpush1.xpose.msra.mxu0 0.0
        %1188 = vmatprep.subr.mxu0 0.0
        %1189 = vmatpush1.xpose.msra.mxu0 0.0
        %1190 = vmatprep.subr.mxu0 0.0
        %1191 = vmatpush1.xpose.msra.mxu0 0.0
        %1192 = vmatprep.subr.mxu0 0.0
        %1193 = vmatpush1.xpose.msra.mxu0 0.0
        %1194 = vmatprep.subr.mxu0 0.0
        %1195 = vmatpush1.xpose.msra.mxu0 0.0
        %1196 = vmatprep.subr.mxu0 0.0
        %1197 = vmatpush1.xpose.msra.mxu0 0.0
        %1198 = vmatprep.subr.mxu0 0.0
        %1199 = vmatpush1.xpose.msra.mxu0 0.0
        %1200 = vmatprep.subr.mxu0 0.0
        %1201 = vmatpush1.xpose.msra.mxu0 0.0
        %1202 = vmatprep.subr.mxu0 0.0
        %1203 = vmatpush1.xpose.msra.mxu0 0.0
        %1204 = vmatprep.subr.mxu0 0.0
        %1205 = vmatpush1.xpose.msra.mxu0 0.0
        %1206 = vmatprep.subr.mxu0 0.0
        %1207 = vmatpush1.xpose.msra.mxu0 0.0
        %1208 = vmatprep.subr.mxu0 0.0
        %1209 = vmatpush1.xpose.msra.mxu0 0.0
        %1210 = vmatprep.subr.mxu0 0.0
        %1211 = vmatpush1.xpose.msra.mxu0 0.0
        %1212 = vmatprep.subr.mxu0 0.0
        %1213 = vmatpush1.xpose.msra.mxu0 0.0
        %1214 = vmatprep.subr.mxu0 0.0
        %1215 = vmatpush1.xpose.msra.mxu0 0.0
        %1216 = vmatprep.subr.mxu0 0.0
        %1217 = vmatpush1.xpose.msra.mxu0 0.0
        %1218 = vmatprep.subr.mxu0 0.0
        %1219 = vmatpush1.xpose.msra.mxu0 0.0
        %1220 = vmatprep.subr.mxu0 0.0
        %1221 = vmatpush1.xpose.msra.mxu0 0.0
        %1222 = vmatprep.subr.mxu0 0.0
        %1223 = vmatpush1.xpose.msra.mxu0 0.0
        %1224 = vmatprep.subr.mxu0 0.0
        %1225 = vmatpush1.xpose.msra.mxu0 0.0
        %1226 = vmatprep.mubr.f32.mxu0 0.0
        %1227 = vmatmul.mubr.f32.gmra.mrb[0].mxu0 %v1158
        %v1228 = vpop.f32.mrb[0].mxu0
        %v1229 = vadd.f32 0.0, %v1228
        %v1230 = vpop.f32.mrb[0].mxu0
        %1231 = vdwg.mxu0
        %v1232 = vsel %vm824, %v1229, -inf
        %1233 = vmax.xlane.f32.xlu0 %v1232
        %v1234 = vpop.xlane.xlu0 %1233
        %v1235 = vsub.f32 %v1229, %v1234
        %v1236 = vmul.f32 %v1235, 1.442695
        %v1237 = vpow.pop %v1236
        %v1238 = vsel %vm824, %v1237, 0.0
        %1239 = vadd.xlane.f32.xlu0 %v1238
        %v1240 = vpop.xlane.xlu0 %1239
        %v1241 = vrcp.pop %v1240
        %v1242 = vmul.f32 %v1237, %v1241
        %s1243 = scalar_lea.vmem %s566, 16 [#allocation15]
        %1244 = vst.msk [vmem:[%s1243] sm:$0xff] %vm824, %v1242
        %1245 = vrot.lane.b32.xlu0 %v821, 112
        %v1246 = vpop.permute.xlu0 %1245
        %v1249 = vsel %vm824, %v1242, 0
        %1251 = vmatprep.subr.mxu0 0.0
        %1252 = vmatpush1.msra.mxu0 %v1246
        %1253 = vmatprep.subr.mxu0 0.0
        %1254 = vmatpush1.msra.mxu0 0.0
        %1255 = vmatprep.subr.mxu0 0.0
        %1256 = vmatpush1.msra.mxu0 0.0
        %1257 = vmatprep.subr.mxu0 0.0
        %1258 = vmatpush1.msra.mxu0 0.0
        %1259 = vmatprep.subr.mxu0 0.0
        %1260 = vmatpush1.msra.mxu0 0.0
        %1261 = vmatprep.subr.mxu0 0.0
        %1262 = vmatpush1.msra.mxu0 0.0
        %1263 = vmatprep.subr.mxu0 0.0
        %1264 = vmatpush1.msra.mxu0 0.0
        %1265 = vmatprep.subr.mxu0 0.0
        %1266 = vmatpush1.msra.mxu0 0.0
        %1267 = vmatprep.subr.mxu0 0.0
        %1268 = vmatpush1.msra.mxu0 0.0
        %1269 = vmatprep.subr.mxu0 0.0
        %1270 = vmatpush1.msra.mxu0 0.0
        %1271 = vmatprep.subr.mxu0 0.0
        %1272 = vmatpush1.msra.mxu0 0.0
        %1273 = vmatprep.subr.mxu0 0.0
        %1274 = vmatpush1.msra.mxu0 0.0
        %1275 = vmatprep.subr.mxu0 0.0
        %1276 = vmatpush1.msra.mxu0 0.0
        %1277 = vmatprep.subr.mxu0 0.0
        %1278 = vmatpush1.msra.mxu0 0.0
        %1279 = vmatprep.subr.mxu0 0.0
        %1280 = vmatpush1.msra.mxu0 0.0
        %1281 = vmatprep.subr.mxu0 0.0
        %1282 = vmatpush1.msra.mxu0 0.0
        %1283 = vmatprep.subr.mxu0 0.0
        %1284 = vmatpush1.msra.mxu0 0.0
        %1285 = vmatprep.subr.mxu0 0.0
        %1286 = vmatpush1.msra.mxu0 0.0
        %1287 = vmatprep.subr.mxu0 0.0
        %1288 = vmatpush1.msra.mxu0 0.0
        %1289 = vmatprep.subr.mxu0 0.0
        %1290 = vmatpush1.msra.mxu0 0.0
        %1291 = vmatprep.subr.mxu0 0.0
        %1292 = vmatpush1.msra.mxu0 0.0
        %1293 = vmatprep.subr.mxu0 0.0
        %1294 = vmatpush1.msra.mxu0 0.0
        %1295 = vmatprep.subr.mxu0 0.0
        %1296 = vmatpush1.msra.mxu0 0.0
        %1297 = vmatprep.subr.mxu0 0.0
        %1298 = vmatpush1.msra.mxu0 0.0
        %1299 = vmatprep.subr.mxu0 0.0
        %1300 = vmatpush1.msra.mxu0 0.0
        %1301 = vmatprep.subr.mxu0 0.0
        %1302 = vmatpush1.msra.mxu0 0.0
        %1303 = vmatprep.subr.mxu0 0.0
        %1304 = vmatpush1.msra.mxu0 0.0
        %1305 = vmatprep.subr.mxu0 0.0
        %1306 = vmatpush1.msra.mxu0 0.0
        %1307 = vmatprep.subr.mxu0 0.0
        %1308 = vmatpush1.msra.mxu0 0.0
        %1309 = vmatprep.subr.mxu0 0.0
        %1310 = vmatpush1.msra.mxu0 0.0
        %1311 = vmatprep.subr.mxu0 0.0
        %1312 = vmatpush1.msra.mxu0 0.0
        %1313 = vmatprep.subr.mxu0 0.0
        %1314 = vmatpush1.msra.mxu0 0.0
        %1315 = vmatprep.mubr.f32.mxu0 0.0
        %1316 = vmatmul.mubr.f32.gmra.mrb[0].mxu0 %v1249
        %v1317 = vpop.f32.mrb[0].mxu0
        %v1318 = vadd.f32 0.0, %v1317
        %v1319 = vpop.f32.mrb[0].mxu0
        %1320 = vdwg.mxu0
        %1321 = vrot.lane.b32.xlu0 %v655, 104
        %v1322 = vpop.permute.xlu0 %1321
        %1323 = vrot.lane.b32.xlu0 %v737, 104
        %v1324 = vpop.permute.xlu0 %1323
        %v1325 = vsel %vm824, %v1322, 0
        %v1327 = vsel %vm824, %v1324, 0
        %1329 = vmatprep.subr.mxu0 0.0
        %1330 = vmatpush1.xpose.msra.mxu0 %v1327
        %1331 = vmatprep.subr.mxu0 0.0
        %1332 = vmatpush1.xpose.msra.mxu0 0.0
        %1333 = vmatprep.subr.mxu0 0.0
        %1334 = vmatpush1.xpose.msra.mxu0 0.0
        %1335 = vmatprep.subr.mxu0 0.0
        %1336 = vmatpush1.xpose.msra.mxu0 0.0
        %1337 = vmatprep.subr.mxu0 0.0
        %1338 = vmatpush1.xpose.msra.mxu0 0.0
        %1339 = vmatprep.subr.mxu0 0.0
        %1340 = vmatpush1.xpose.msra.mxu0 0.0
        %1341 = vmatprep.subr.mxu0 0.0
        %1342 = vmatpush1.xpose.msra.mxu0 0.0
        %1343 = vmatprep.subr.mxu0 0.0
        %1344 = vmatpush1.xpose.msra.mxu0 0.0
        %1345 = vmatprep.subr.mxu0 0.0
        %1346 = vmatpush1.xpose.msra.mxu0 0.0
        %1347 = vmatprep.subr.mxu0 0.0
        %1348 = vmatpush1.xpose.msra.mxu0 0.0
        %1349 = vmatprep.subr.mxu0 0.0
        %1350 = vmatpush1.xpose.msra.mxu0 0.0
        %1351 = vmatprep.subr.mxu0 0.0
        %1352 = vmatpush1.xpose.msra.mxu0 0.0
        %1353 = vmatprep.subr.mxu0 0.0
        %1354 = vmatpush1.xpose.msra.mxu0 0.0
        %1355 = vmatprep.subr.mxu0 0.0
        %1356 = vmatpush1.xpose.msra.mxu0 0.0
        %1357 = vmatprep.subr.mxu0 0.0
        %1358 = vmatpush1.xpose.msra.mxu0 0.0
        %1359 = vmatprep.subr.mxu0 0.0
        %1360 = vmatpush1.xpose.msra.mxu0 0.0
        %1361 = vmatprep.subr.mxu0 0.0
        %1362 = vmatpush1.xpose.msra.mxu0 0.0
        %1363 = vmatprep.subr.mxu0 0.0
        %1364 = vmatpush1.xpose.msra.mxu0 0.0
        %1365 = vmatprep.subr.mxu0 0.0
        %1366 = vmatpush1.xpose.msra.mxu0 0.0
        %1367 = vmatprep.subr.mxu0 0.0
        %1368 = vmatpush1.xpose.msra.mxu0 0.0
        %1369 = vmatprep.subr.mxu0 0.0
        %1370 = vmatpush1.xpose.msra.mxu0 0.0
        %1371 = vmatprep.subr.mxu0 0.0
        %1372 = vmatpush1.xpose.msra.mxu0 0.0
        %1373 = vmatprep.subr.mxu0 0.0
        %1374 = vmatpush1.xpose.msra.mxu0 0.0
        %1375 = vmatprep.subr.mxu0 0.0
        %1376 = vmatpush1.xpose.msra.mxu0 0.0
        %1377 = vmatprep.subr.mxu0 0.0
        %1378 = vmatpush1.xpose.msra.mxu0 0.0
        %1379 = vmatprep.subr.mxu0 0.0
        %1380 = vmatpush1.xpose.msra.mxu0 0.0
        %1381 = vmatprep.subr.mxu0 0.0
        %1382 = vmatpush1.xpose.msra.mxu0 0.0
        %1383 = vmatprep.subr.mxu0 0.0
        %1384 = vmatpush1.xpose.msra.mxu0 0.0
        %1385 = vmatprep.subr.mxu0 0.0
        %1386 = vmatpush1.xpose.msra.mxu0 0.0
        %1387 = vmatprep.subr.mxu0 0.0
        %1388 = vmatpush1.xpose.msra.mxu0 0.0
        %1389 = vmatprep.subr.mxu0 0.0
        %1390 = vmatpush1.xpose.msra.mxu0 0.0
        %1391 = vmatprep.subr.mxu0 0.0
        %1392 = vmatpush1.xpose.msra.mxu0 0.0
        %1393 = vmatprep.mubr.f32.mxu0 0.0
        %1394 = vmatmul.mubr.f32.gmra.mrb[0].mxu0 %v1325
        %v1395 = vpop.f32.mrb[0].mxu0
        %v1396 = vadd.f32 0.0, %v1395
        %v1397 = vpop.f32.mrb[0].mxu0
        %1398 = vdwg.mxu0
        %v1399 = vsel %vm824, %v1396, -inf
        %1400 = vmax.xlane.f32.xlu0 %v1399
        %v1401 = vpop.xlane.xlu0 %1400
        %v1402 = vsub.f32 %v1396, %v1401
        %v1403 = vmul.f32 %v1402, 1.442695
        %v1404 = vpow.pop %v1403
        %v1405 = vsel %vm824, %v1404, 0.0
        %1406 = vadd.xlane.f32.xlu0 %v1405
        %v1407 = vpop.xlane.xlu0 %1406
        %v1408 = vrcp.pop %v1407
        %v1409 = vmul.f32 %v1404, %v1408
        %s1410 = scalar_lea.vmem %s566, 24 [#allocation15]
        %1411 = vst.msk [vmem:[%s1410] sm:$0xff] %vm824, %v1409
        %1412 = vrot.lane.b32.xlu0 %v821, 104
        %v1413 = vpop.permute.xlu0 %1412
        %v1416 = vsel %vm824, %v1409, 0
        %1418 = vmatprep.subr.mxu0 0.0
        %1419 = vmatpush1.msra.mxu0 %v1413
        %1420 = vmatprep.subr.mxu0 0.0
        %1421 = vmatpush1.msra.mxu0 0.0
        %1422 = vmatprep.subr.mxu0 0.0
        %1423 = vmatpush1.msra.mxu0 0.0
        %1424 = vmatprep.subr.mxu0 0.0
        %1425 = vmatpush1.msra.mxu0 0.0
        %1426 = vmatprep.subr.mxu0 0.0
        %1427 = vmatpush1.msra.mxu0 0.0
        %1428 = vmatprep.subr.mxu0 0.0
        %1429 = vmatpush1.msra.mxu0 0.0
        %1430 = vmatprep.subr.mxu0 0.0
        %1431 = vmatpush1.msra.mxu0 0.0
        %1432 = vmatprep.subr.mxu0 0.0
        %1433 = vmatpush1.msra.mxu0 0.0
        %1434 = vmatprep.subr.mxu0 0.0
        %1435 = vmatpush1.msra.mxu0 0.0
        %1436 = vmatprep.subr.mxu0 0.0
        %1437 = vmatpush1.msra.mxu0 0.0
        %1438 = vmatprep.subr.mxu0 0.0
        %1439 = vmatpush1.msra.mxu0 0.0
        %1440 = vmatprep.subr.mxu0 0.0
        %1441 = vmatpush1.msra.mxu0 0.0
        %1442 = vmatprep.subr.mxu0 0.0
        %1443 = vmatpush1.msra.mxu0 0.0
        %1444 = vmatprep.subr.mxu0 0.0
        %1445 = vmatpush1.msra.mxu0 0.0
        %1446 = vmatprep.subr.mxu0 0.0
        %1447 = vmatpush1.msra.mxu0 0.0
        %1448 = vmatprep.subr.mxu0 0.0
        %1449 = vmatpush1.msra.mxu0 0.0
        %1450 = vmatprep.subr.mxu0 0.0
        %1451 = vmatpush1.msra.mxu0 0.0
        %1452 = vmatprep.subr.mxu0 0.0
        %1453 = vmatpush1.msra.mxu0 0.0
        %1454 = vmatprep.subr.mxu0 0.0
        %1455 = vmatpush1.msra.mxu0 0.0
        %1456 = vmatprep.subr.mxu0 0.0
        %1457 = vmatpush1.msra.mxu0 0.0
        %1458 = vmatprep.subr.mxu0 0.0
        %1459 = vmatpush1.msra.mxu0 0.0
        %1460 = vmatprep.subr.mxu0 0.0
        %1461 = vmatpush1.msra.mxu0 0.0
        %1462 = vmatprep.subr.mxu0 0.0
        %1463 = vmatpush1.msra.mxu0 0.0
        %1464 = vmatprep.subr.mxu0 0.0
        %1465 = vmatpush1.msra.mxu0 0.0
        %1466 = vmatprep.subr.mxu0 0.0
        %1467 = vmatpush1.msra.mxu0 0.0
        %1468 = vmatprep.subr.mxu0 0.0
        %1469 = vmatpush1.msra.mxu0 0.0
        %1470 = vmatprep.subr.mxu0 0.0
        %1471 = vmatpush1.msra.mxu0 0.0
        %1472 = vmatprep.subr.mxu0 0.0
        %1473 = vmatpush1.msra.mxu0 0.0
        %1474 = vmatprep.subr.mxu0 0.0
        %1475 = vmatpush1.msra.mxu0 0.0
        %1476 = vmatprep.subr.mxu0 0.0
        %1477 = vmatpush1.msra.mxu0 0.0
        %1478 = vmatprep.subr.mxu0 0.0
        %1479 = vmatpush1.msra.mxu0 0.0
        %1480 = vmatprep.subr.mxu0 0.0
        %1481 = vmatpush1.msra.mxu0 0.0
        %1482 = vmatprep.mubr.f32.mxu0 0.0
        %1483 = vmatmul.mubr.f32.gmra.mrb[0].mxu0 %v1416
        %v1484 = vpop.f32.mrb[0].mxu0
        %v1485 = vadd.f32 0.0, %v1484
        %v1486 = vpop.f32.mrb[0].mxu0
        %1487 = vdwg.mxu0
        %1489 = vrot.lane.b32.xlu0 %v1151, 8
        %v1490 = vpop.permute.xlu0 %1489
        %1493 = vrot.lane.b32.xlu0 %v1318, 16
        %v1494 = vpop.permute.xlu0 %1493
        %1497 = vrot.lane.b32.xlu0 %v1485, 24
        %v1498 = vpop.permute.xlu0 %1497
        %v1500 = vsel %vm824, %v983, %v1490
        %vm1501 = vcmask 130048
        %v1502 = vsel %vm1501, %v1500, %v1494
        %vm1503 = vcmask 195584
        %v1504 = vsel %vm1503, %v1502, %v1498
        %v1505 = vld [vmem:[%s9] sm:$0xff]
        %v1506 = vld [vmem:[%s9 + $0x8] sm:$0xff]
        %v1507 = vld [vmem:[%s9 + $0x10] sm:$0xff]
        %v1508 = vld [vmem:[%s9 + $0x18] sm:$0xff]
        %v1509 = vld [vmem:[%s10] sm:$0x1]
        %v1511 = vlaneseq
        %v1512 = vshrl.u32 %v1511, 7
        %v1513 = vsub.s32 0, %v1512
        %v1514 = vrot.slane %v1509, %v1513
        %v1517 = vsel %vm581, %v1504, 0
        %1519 = vmatprep.subr.mxu0 0.0
        %1520 = vmatpush1.msra.mxu0 %v1505
        %1521 = vmatprep.subr.mxu0 0.0
        %1522 = vmatpush1.msra.mxu0 %v1506
        %1523 = vmatprep.subr.mxu0 0.0
        %1524 = vmatpush1.msra.mxu0 %v1507
        %1525 = vmatprep.subr.mxu0 0.0
        %1526 = vmatpush1.msra.mxu0 %v1508
        %1527 = vmatprep.subr.mxu0 0.0
        %1528 = vmatpush1.msra.mxu0 0.0
        %1529 = vmatprep.subr.mxu0 0.0
        %1530 = vmatpush1.msra.mxu0 0.0
        %1531 = vmatprep.subr.mxu0 0.0
        %1532 = vmatpush1.msra.mxu0 0.0
        %1533 = vmatprep.subr.mxu0 0.0
        %1534 = vmatpush1.msra.mxu0 0.0
        %1535 = vmatprep.subr.mxu0 0.0
        %1536 = vmatpush1.msra.mxu0 0.0
        %1537 = vmatprep.subr.mxu0 0.0
        %1538 = vmatpush1.msra.mxu0 0.0
        %1539 = vmatprep.subr.mxu0 0.0
        %1540 = vmatpush1.msra.mxu0 0.0
        %1541 = vmatprep.subr.mxu0 0.0
        %1542 = vmatpush1.msra.mxu0 0.0
        %1543 = vmatprep.subr.mxu0 0.0
        %1544 = vmatpush1.msra.mxu0 0.0
        %1545 = vmatprep.subr.mxu0 0.0
        %1546 = vmatpush1.msra.mxu0 0.0
        %1547 = vmatprep.subr.mxu0 0.0
        %1548 = vmatpush1.msra.mxu0 0.0
        %1549 = vmatprep.subr.mxu0 0.0
        %1550 = vmatpush1.msra.mxu0 0.0
        %1551 = vmatprep.subr.mxu0 0.0
        %1552 = vmatpush1.msra.mxu0 0.0
        %1553 = vmatprep.subr.mxu0 0.0
        %1554 = vmatpush1.msra.mxu0 0.0
        %1555 = vmatprep.subr.mxu0 0.0
        %1556 = vmatpush1.msra.mxu0 0.0
        %1557 = vmatprep.subr.mxu0 0.0
        %1558 = vmatpush1.msra.mxu0 0.0
        %1559 = vmatprep.subr.mxu0 0.0
        %1560 = vmatpush1.msra.mxu0 0.0
        %1561 = vmatprep.subr.mxu0 0.0
        %1562 = vmatpush1.msra.mxu0 0.0
        %1563 = vmatprep.subr.mxu0 0.0
        %1564 = vmatpush1.msra.mxu0 0.0
        %1565 = vmatprep.subr.mxu0 0.0
        %1566 = vmatpush1.msra.mxu0 0.0
        %1567 = vmatprep.subr.mxu0 0.0
        %1568 = vmatpush1.msra.mxu0 0.0
        %1569 = vmatprep.subr.mxu0 0.0
        %1570 = vmatpush1.msra.mxu0 0.0
        %1571 = vmatprep.subr.mxu0 0.0
        %1572 = vmatpush1.msra.mxu0 0.0
        %1573 = vmatprep.subr.mxu0 0.0
        %1574 = vmatpush1.msra.mxu0 0.0
        %1575 = vmatprep.subr.mxu0 0.0
        %1576 = vmatpush1.msra.mxu0 0.0
        %1577 = vmatprep.subr.mxu0 0.0
        %1578 = vmatpush1.msra.mxu0 0.0
        %1579 = vmatprep.subr.mxu0 0.0
        %1580 = vmatpush1.msra.mxu0 0.0
        %1581 = vmatprep.subr.mxu0 0.0
        %1582 = vmatpush1.msra.mxu0 0.0
        %1583 = vmatprep.mubr.f32.mxu0 0.0
        %1584 = vmatmul.mubr.f32.gmra.mrb[0].mxu0 %v1517
        %v1585 = vpop.f32.mrb[0].mxu0
        %v1586 = vadd.f32 %v1514, %v1585
        %v1587 = vpop.f32.mrb[0].mxu0
        %1588 = vdwg.mxu0
        %1589 = vst.msk [vmem:[%s559] sm:$0xff] %vm581, %v1586
        %s1590 = sand.u32 %s292, 1
        %s1591 = scalar_lea.sflag [#allocation4], %s1590
        %s1592 = sand.u32 %s292, 1
        %s1593 = smul.addr %s1592, 8
        %s1594 = scalar_lea.vmem [#allocation14], %s1593
        %s1595 = sand.u32 %s318, 1
        %s1596 = scalar_lea.sflag [#allocation16], %s1595
        %s1597 = sand.u32 %s318, 1
        %s1598 = smul.addr %s1597, 32
        %s1599 = scalar_lea.vmem [#allocation15], %s1598
        // Predicated region
        $region93: #{tpu_custom_call.1} parent=63 // pred_check
          %p1600 = pneg %p302
        $region94: #{tpu_custom_call.1} parent=63 // pred_check_branch
          %1602 = sbr.rel (%p1600) target = $region96
        $region95: #{tpu_custom_call.1} parent=63 // pred_region
          %s1604 = ssub.s32 128, 128
          %1605 = vsyncadd %s1591, %s1604
          %s1606 = smul.addr %s38, 128
          %s1607 = scalar_lea.hbm %s11, %s1606
          %s1609 = sshll.u32 %s1594, 4
          %s1610 = int_to_ptr.vmem [resolvable:$true] %s1609
          %1612 = dma.vmem_to_hbm [thread:$0]  %s1610, 128, %s1607, %s1591
        $region96: #{tpu_custom_call.1} parent=63 // pred_fallthru
          _
        // Predicated region
        $region97: #{tpu_custom_call.1} parent=63 // pred_check
          %p1613 = pneg %p328
        $region98: #{tpu_custom_call.1} parent=63 // pred_check_branch
          %1615 = sbr.rel (%p1613) target = $region100
        $region99: #{tpu_custom_call.1} parent=63 // pred_region
          %s1617 = ssub.s32 512, 512
          %1618 = vsyncadd %s1596, %s1617
          %s1619 = smul.addr %s38, 4
          %s1620 = smul.addr %s1619, 128
          %s1621 = scalar_lea.hbm %s12, %s1620
          %s1622 = sshll.u32 %s1599, 4
          %s1623 = int_to_ptr.vmem [resolvable:$true] %s1622
          %1628 = dma.vmem_to_hbm [thread:$0]  %s1623, 512, %s1621, %s1596, 128, 128, 8
        $region100: #{tpu_custom_call.1} parent=63 // pred_fallthru
          _
      $region64: #{tpu_custom_call.1} parent=5 // pred_fallthru
        _
      %p1629 = scmp.le.s32.totalorder 2, %s33
      // Predicated region
      $region101: #{tpu_custom_call.1} parent=5 // pred_check
        %p1630 = pneg %p1629
      $region102: #{tpu_custom_call.1} parent=5 // pred_check_branch
        %1632 = sbr.rel (%p1630) target = $region104
      $region103: #{tpu_custom_call.1} parent=5 // pred_region
        %s1633 = ssub.s32 %s33, 2
        // Predicated region
        $region105: #{tpu_custom_call.1} parent=103 // pred_check
          %p1634 = pneg %p308
        $region106: #{tpu_custom_call.1} parent=103 // pred_check_branch
          %1636 = sbr.rel (%p1634) target = $region108
        $region107: #{tpu_custom_call.1} parent=103 // pred_region
          %s1637 = sand.u32 %s293, 1
          %s1638 = scalar_lea.sflag [#allocation4], %s1637
          %s1639 = sand.u32 %s293, 1
          %s1640 = smul.addr %s1639, 8
          %s1641 = scalar_lea.vmem [#allocation14], %s1640
          %1642 = dma.done %s1638, 128
        $region108: #{tpu_custom_call.1} parent=103 // pred_fallthru
          _
        // Predicated region
        $region109: #{tpu_custom_call.1} parent=103 // pred_check
          %p1643 = pneg %p334
        $region110: #{tpu_custom_call.1} parent=103 // pred_check_branch
          %1645 = sbr.rel (%p1643) target = $region112
        $region111: #{tpu_custom_call.1} parent=103 // pred_region
          %s1646 = sand.u32 %s319, 1
          %s1647 = scalar_lea.sflag [#allocation16], %s1646
          %s1648 = sand.u32 %s319, 1
          %s1649 = smul.addr %s1648, 32
          %s1650 = scalar_lea.vmem [#allocation15], %s1649
          %1651 = dma.done %s1647, 512
        $region112: #{tpu_custom_call.1} parent=103 // pred_fallthru
          _
      $region104: #{tpu_custom_call.1} parent=5 // pred_fallthru
        _
    $region6: #{tpu_custom_call.1} parent=1 // loop_footer
      %s37 = sadd.s32 1, %s33
    $region7: #{tpu_custom_call.1} parent=1 // loop_footer_branch
      %32 = sbr.rel target = $region3
    $region8: #{tpu_custom_call.1} parent=1 // loop_exit
      _
    %1652 = vsyncpa [#allocation3], 1
    %s1653 = scalar_lea.sflag [#allocation3], 1
    %1654 = vsyncpa %s1653, 1
    %1655 = vsyncpa [#allocation6], 1
    %s1656 = scalar_lea.sflag [#allocation6], 1
    %1657 = vsyncpa %s1656, 1
    %1658 = vsyncpa [#allocation9], 1
    %1659 = vsyncpa [#allocation12], 1
    %1660 = vsyncpa [#allocation4], 1
    %s1661 = scalar_lea.sflag [#allocation4], 1
    %1662 = vsyncpa %s1661, 1
    %1663 = vsyncpa [#allocation16], 1
    %s1664 = scalar_lea.sflag [#allocation16], 1
    %1665 = vsyncpa %s1664, 1

</llo_original>
